<compile_context>
chip_gen: v7x
topology: tpu7x:2x2x1
jax: 0.10.0
libtpu: 0.0.40
codegen_flags: <defaults>
</compile_context>

<pallas_src>
import jax
import jax.numpy as jnp
import numpy as np
from jax.experimental import pallas as pl
from jax.experimental.pallas import tpu as pltpu


def _round_up(x, m):
  return ((x + m - 1) // m) * m


def _tile(length, cap):
  """Return (tile, padded_length); tile is a multiple of 16 (bf16 packing)."""
  t = min(cap, _round_up(length, 16))
  return t, _round_up(length, t)


def flash_attention_kernel(process_ref, bias_ref, q_ref, k_ref, v_ref,
                           o_ref, m_scr, l_scr, acc_scr):
  """grid = (batch, q-tiles, kv-tiles); kv (reduction) axis is innermost."""
  ki = pl.program_id(2)

  @pl.when(ki == 0)
  def _init():
    m_scr[...] = jnp.full(m_scr.shape, -jnp.inf, dtype=jnp.float32)
    l_scr[...] = jnp.zeros(l_scr.shape, dtype=jnp.float32)
    acc_scr[...] = jnp.zeros(acc_scr.shape, dtype=jnp.float32)

  # Per-(batch, q-tile, kv-tile) skip flag, scalar-prefetched into SMEM.
  flat = (pl.program_id(0) * pl.num_programs(1)
          + pl.program_id(1)) * pl.num_programs(2) + ki

  @pl.when(process_ref[flat] != 0)
  def _update():
    # Scores (H, tq, tk): bf16 MXU inputs (Dp lane-dense), f32 accumulation.
    s = jnp.einsum('hqd,hkd->hqk', q_ref[0], k_ref[0],
                   preferred_element_type=jnp.float32)
    s = s + bias_ref[0].astype(jnp.float32)[None, :, :]

    # Online softmax update (f32 on VPU / EUP).
    m_prev = m_scr[...]
    m_new = jnp.maximum(m_prev, jnp.max(s, axis=-1, keepdims=True))
    alpha = jnp.exp(m_prev - m_new)
    p = jnp.exp(s - m_new)
    l_scr[...] = alpha * l_scr[...] + jnp.sum(p, axis=-1, keepdims=True)
    acc_scr[...] = alpha * acc_scr[...] + jnp.einsum(
        'hqk,hkd->hqd', p.astype(jnp.bfloat16), v_ref[0],
        preferred_element_type=jnp.float32)
    m_scr[...] = m_new

  @pl.when(ki == pl.num_programs(2) - 1)
  def _finalize():
    inv_l = pl.reciprocal(l_scr[...], approx=True)   # EUP, not a VPU divide
    o_ref[0] = (acc_scr[...] * inv_l).astype(o_ref.dtype)


def self_attention(values, keys, query, mask, params, *, heads,
                   q_tile_cap=256, kv_tile_cap=256):
  """Matches selfAttention.forward(values, keys, query, mask)."""
  N, Lv, E = values.shape
  Lk = keys.shape[1]
  Lq = query.shape[1]
  H = heads
  D = E // H
  assert D * H == E, "Embed size needs to be divisible by heads"
  assert Lv == Lk, "value_len must equal key_len"

  wv, wk, wq, wfc, bfc = params
  scale = 1.0 / (E ** 0.5)

  Dp = _round_up(D, 128)                    # lane-dense head dim
  tq, Lq_pad = _tile(Lq, q_tile_cap)
  tk, Lk_pad = _tile(Lk, kv_tile_cap)
  nq, nk = Lq_pad // tq, Lk_pad // tk

  # ---- Hoisted per-head projections: one batched matmul each, head-major
  # (N, H, L, Dp) outputs with zero-padded head dim.  q is pre-scaled by
  # 1/sqrt(E) (folded into the weight), so the kernel only adds the bias.
  def _proj(x, L, w, s=1.0):
    w_p = jnp.pad(w * s, ((0, Dp - D), (0, 0)))          # (Dp, D); y = x @ W^T
    xh = x.reshape(N, L, H, D)
    return jnp.einsum('nlhd,ed->nhle', xh, w_p)          # f32

  q_p = _proj(query, Lq, wq, scale)
  k_p = _proj(keys, Lk, wk)
  v_p = _proj(values, Lv, wv)
  q_p = jnp.pad(q_p, ((0, 0), (0, 0), (0, Lq_pad - Lq), (0, 0))).astype(jnp.bfloat16)
  k_p = jnp.pad(k_p, ((0, 0), (0, 0), (0, Lk_pad - Lk), (0, 0))).astype(jnp.bfloat16)
  v_p = jnp.pad(v_p, ((0, 0), (0, 0), (0, Lk_pad - Lk), (0, 0))).astype(jnp.bfloat16)

  # ---- Mask -> additive bias (mask == 0 semantics match masked_fill).
  if mask is None:
    mask3 = jnp.ones((1, Lq, Lk), jnp.float32)
  else:
    m = jnp.asarray(mask)
    if m.ndim == 2:
      mask3 = m[None]
    elif m.ndim == 4:                      # (N, 1, Lq, Lk) broadcast-over-heads
      mask3 = m[:, 0]
    else:
      mask3 = m
    mask3 = mask3.astype(jnp.float32)
  Nb = mask3.shape[0]
  assert Nb in (1, N), "mask batch dim must be 1 or N"

  # Pad: attend-everything for padded q rows (keeps l > 0, rows are discarded),
  # masked-out for padded k columns.
  mask_p = jnp.pad(mask3, ((0, 0), (0, Lq_pad - Lq), (0, 0)), constant_values=1.0)
  mask_p = jnp.pad(mask_p, ((0, 0), (0, 0), (0, Lk_pad - Lk)), constant_values=0.0)

  neg_real = jnp.float32(-1e20 * scale)    # masked_fill(-1e20) then / sqrt(E)
  neg_pad = jnp.float32(-2e20 * scale)     # strictly lower -> padded keys never
                                           # tie with real masked keys
  bias = jnp.where(mask_p == 0.0, neg_real, jnp.float32(0.0))
  bias = bias.at[:, :, Lk:].set(neg_pad)
  bias = bias.astype(jnp.bfloat16)         # -1.77e19 is bf16-representable

  # ---- Per-tile skip flags (scalar prefetch, SMEM, flattened 1-D).
  # A tile is processed if any of its mask entries is non-zero; a q-tile row
  # with no active tiles processes everything (reference's uniform-attention
  # fallback for fully-masked rows).  TODO(synk): fully-masked rows that share
  # a q-tile with unmasked rows normalize over the processed-key subset only
  # (degenerate rows; output is semantically meaningless either way).
  mt = mask_p.reshape(Nb, nq, tq, nk, tk)
  tile_any = jnp.any(mt != 0.0, axis=(2, 4))                 # (Nb, nq, nk)
  row_any = jnp.any(tile_any, axis=-1, keepdims=True)        # (Nb, nq, 1)
  process = jnp.logical_or(tile_any, jnp.logical_not(row_any))
  process_flags = jnp.broadcast_to(process, (N, nq, nk)).astype(jnp.int32).reshape(-1)

  if Nb > 1:
    bias_map = lambda n, qi, ki, act: (n, qi, ki)
  else:                                    # batch-invariant: no O(N*L^2) stream
    bias_map = lambda n, qi, ki, act: (0, qi, ki)

  ctx = pl.pallas_call(
      flash_attention_kernel,
      out_shape=jax.ShapeDtypeStruct((N, H, Lq_pad, Dp), jnp.bfloat16),
      grid_spec=pltpu.PrefetchScalarGridSpec(
          num_scalar_prefetch=1,
          grid=(N, nq, nk),
          in_specs=[
              pl.BlockSpec((1, tq, tk), bias_map),                           # bias
              pl.BlockSpec((1, H, tq, Dp), lambda n, qi, ki, act: (n, 0, qi, 0)),  # q
              pl.BlockSpec((1, H, tk, Dp), lambda n, qi, ki, act: (n, 0, ki, 0)),  # k
              pl.BlockSpec((1, H, tk, Dp), lambda n, qi, ki, act: (n, 0, ki, 0)),  # v
          ],
          out_specs=pl.BlockSpec((1, H, tq, Dp),
                                 lambda n, qi, ki, act: (n, 0, qi, 0)),
          scratch_shapes=[
              pltpu.VMEM((H, tq, 1), jnp.float32),    # running max m
              pltpu.VMEM((H, tq, 1), jnp.float32),    # running sum l
              pltpu.VMEM((H, tq, Dp), jnp.float32),   # output accumulator
          ]),
      compiler_params=pltpu.CompilerParams(
          dimension_semantics=("parallel", "parallel", "arbitrary"),
          # v7x has 64 MiB VMEM/TC; 56 MiB leaves headroom and is fine on
          # v5e/v6e (128 MiB).  Actual usage here is only a few MiB/tile.
          vmem_limit_bytes=56 * 1024 * 1024),
  )(process_flags, bias, q_p, k_p, v_p)

  # ---- Un-pad, merge heads, fc_out (hoisted: plain XLA matmul; keeps the
  # (E, E) weight out of VMEM and avoids an in-kernel head-merge transpose).
  ctx = ctx[:, :, :Lq, :D].astype(jnp.float32)
  ctx = jnp.transpose(ctx, (0, 2, 1, 3)).reshape(N, Lq, E)
  return ctx @ wfc.T + bfc


def reference_self_attention(values, keys, query, mask, params, *, heads):
  """Pure-JAX (f32) transcription of the PyTorch forward, for correctness."""
  wv, wk, wq, wfc, bfc = params
  N, Lv, E = values.shape
  Lk, Lq = keys.shape[1], query.shape[1]
  D = E // heads
  v = values.reshape(N, Lv, heads, D) @ wv.T
  k = keys.reshape(N, Lk, heads, D) @ wk.T
  q = query.reshape(N, Lq, heads, D) @ wq.T
  energy = jnp.einsum('nqhd,nkhd->nhqk', q, k)
  if mask is not None:
    m = jnp.asarray(mask).astype(jnp.float32)
    if m.ndim == 2:
      m = m[None]
    if m.ndim == 3:
      m = m[:, None]
    energy = jnp.where(m == 0.0, jnp.float32(-1e20), energy)
  attn = jax.nn.softmax(energy / (E ** 0.5), axis=3)
  out = jnp.einsum('nhqk,nkhd->nqhd', attn, v).reshape(N, Lq, heads * D)
  return out @ wfc.T + bfc


if __name__ == "__main__":
  # Small shapes consistent with the module: batch=2, seq=8, embed=32, heads=4.
  N, L, E, H = 2, 8, 32, 4
  D = E // H

  key = jax.random.PRNGKey(0)
  kv_, kk_, kq_, kwv, kwk, kwq, kwfc, kbfc = jax.random.split(key, 8)

  values = jax.random.normal(kv_, (N, L, E), dtype=jnp.float32)
  keys_in = jax.random.normal(kk_, (N, L, E), dtype=jnp.float32)
  query = jax.random.normal(kq_, (N, L, E), dtype=jnp.float32)

  # Deterministic parameters (PyTorch layout: Linear weight is (out, in)).
  wv = 0.1 * jax.random.normal(kwv, (D, D), dtype=jnp.float32)
  wk = 0.1 * jax.random.normal(kwk, (D, D), dtype=jnp.float32)
  wq = 0.1 * jax.random.normal(kwq, (D, D), dtype=jnp.float32)
  wfc = 0.1 * jax.random.normal(kwfc, (E, E), dtype=jnp.float32)
  bfc = 0.1 * jax.random.normal(kbfc, (E,), dtype=jnp.float32)
  params = (wv, wk, wq, wfc, bfc)

  # Causal mask (1 = keep, 0 = masked); 2-D -> batch-invariant bias path.
  mask = jnp.tril(jnp.ones((L, L), dtype=jnp.float32))

  out = self_attention(values, keys_in, query, mask, params, heads=H)
  out = jax.block_until_ready(out)

  ref = reference_self_attention(values, keys_in, query, mask, params, heads=H)
  # bf16 MXU inputs (f32 accumulation) + approx reciprocal -> loose tolerance.
  np.testing.assert_allclose(np.asarray(out), np.asarray(ref),
                             rtol=2e-2, atol=2e-2)
  print("KERNEL_OK")
</pallas_src>

<mosaic_0001>
module attributes {stable_mosaic.version = 11 : i64} {
  func.func @flash_attention_kernel(%arg0: i32, %arg1: i32, %arg2: i32, %arg3: memref<2xi32, #tpu.memory_space<smem>>, %arg4: memref<1x16x16xbf16, #tpu.memory_space<vmem>>, %arg5: memref<1x4x16x128xbf16, #tpu.memory_space<vmem>>, %arg6: memref<1x4x16x128xbf16, #tpu.memory_space<vmem>>, %arg7: memref<1x4x16x128xbf16, #tpu.memory_space<vmem>>, %arg8: memref<1x4x16x128xbf16, #tpu.memory_space<vmem>>, %arg9: memref<4x16x1xf32, #tpu.memory_space<vmem>>, %arg10: memref<4x16x1xf32, #tpu.memory_space<vmem>>, %arg11: memref<4x16x128xf32, #tpu.memory_space<vmem>>) attributes {dimension_semantics = [#tpu.dimension_semantics<parallel>, #tpu.dimension_semantics<parallel>, #tpu.dimension_semantics<arbitrary>], iteration_bounds = array<i64: 2, 1, 1>, scalar_prefetch = 1 : i64, scratch_operands = 3 : i64, tpu.core_type = #tpu.core_type<tc>, window_params = [{transform_indices = @transform_0, window_bounds = array<i64: 1, 16, 16>}, {transform_indices = @transform_1, window_bounds = array<i64: 1, 4, 16, 128>}, {transform_indices = @transform_2, window_bounds = array<i64: 1, 4, 16, 128>}, {transform_indices = @transform_3, window_bounds = array<i64: 1, 4, 16, 128>}, {transform_indices = @transform_4, window_bounds = array<i64: 1, 4, 16, 128>}]} {
    %c0_i32 = arith.constant 0 : i32
    %0 = arith.cmpi eq, %arg2, %c0_i32 : i32
    %1 = arith.extui %0 : i1 to i32
    %c0_i32_0 = arith.constant 0 : i32
    %2 = arith.cmpi ne, %1, %c0_i32_0 : i32
    scf.if %2 {
      %cst = arith.constant 0xFF800000 : f32
      %15 = vector.broadcast %cst : f32 to vector<4x16x1xf32>
      %c0 = arith.constant 0 : index
      %c0_6 = arith.constant 0 : index
      %c0_7 = arith.constant 0 : index
      %16 = vector.load %arg9[%c0, %c0_6, %c0_7] : memref<4x16x1xf32, #tpu.memory_space<vmem>>, vector<4x16x1xf32>
      tpu.vector_store %arg9[%c0, %c0_6, %c0_7], %15 {strides = array<i32>} : memref<4x16x1xf32, #tpu.memory_space<vmem>>, vector<4x16x1xf32>,
      %cst_8 = arith.constant 0.000000e+00 : f32
      %17 = vector.broadcast %cst_8 : f32 to vector<4x16x1xf32>
      %c0_9 = arith.constant 0 : index
      %c0_10 = arith.constant 0 : index
      %c0_11 = arith.constant 0 : index
      %18 = vector.load %arg10[%c0_9, %c0_10, %c0_11] : memref<4x16x1xf32, #tpu.memory_space<vmem>>, vector<4x16x1xf32>
      tpu.vector_store %arg10[%c0_9, %c0_10, %c0_11], %17 {strides = array<i32>} : memref<4x16x1xf32, #tpu.memory_space<vmem>>, vector<4x16x1xf32>,
      %cst_12 = arith.constant 0.000000e+00 : f32
      %19 = vector.broadcast %cst_12 : f32 to vector<4x16x128xf32>
      %c0_13 = arith.constant 0 : index
      %c0_14 = arith.constant 0 : index
      %c0_15 = arith.constant 0 : index
      %20 = vector.load %arg11[%c0_13, %c0_14, %c0_15] : memref<4x16x128xf32, #tpu.memory_space<vmem>>, vector<4x16x128xf32>
      tpu.vector_store %arg11[%c0_13, %c0_14, %c0_15], %19 {strides = array<i32>} : memref<4x16x128xf32, #tpu.memory_space<vmem>>, vector<4x16x128xf32>,
    } else {
    }
    %c1_i32 = arith.constant 1 : i32
    %3 = arith.muli %arg0, %c1_i32 : i32
    %4 = arith.addi %3, %arg1 : i32
    %c1_i32_1 = arith.constant 1 : i32
    %5 = arith.muli %4, %c1_i32_1 : i32
    %6 = arith.addi %5, %arg2 : i32
    %7 = arith.index_cast %6 : i32 to index
    %8 = memref.load %arg3[%7] : memref<2xi32, #tpu.memory_space<smem>>
    %c0_i32_2 = arith.constant 0 : i32
    %9 = arith.cmpi ne, %8, %c0_i32_2 : i32
    %10 = arith.extui %9 : i1 to i32
    %c0_i32_3 = arith.constant 0 : i32
    %11 = arith.cmpi ne, %10, %c0_i32_3 : i32
    scf.if %11 {
      %c0 = arith.constant 0 : index
      %c0_6 = arith.constant 0 : index
      %c0_7 = arith.constant 0 : index
      %c0_8 = arith.constant 0 : index
      %15 = vector.load %arg5[%c0, %c0_6, %c0_7, %c0_8] : memref<1x4x16x128xbf16, #tpu.memory_space<vmem>>, vector<1x4x16x128xbf16>
      %16 = vector.shape_cast %15 : vector<1x4x16x128xbf16> to vector<4x16x128xbf16>
      %c0_9 = arith.constant 0 : index
      %c0_10 = arith.constant 0 : index
      %c0_11 = arith.constant 0 : index
      %c0_12 = arith.constant 0 : index
      %17 = vector.load %arg6[%c0_9, %c0_10, %c0_11, %c0_12] : memref<1x4x16x128xbf16, #tpu.memory_space<vmem>>, vector<1x4x16x128xbf16>
      %18 = vector.shape_cast %17 : vector<1x4x16x128xbf16> to vector<4x16x128xbf16>
      "tpu.trace_start"() <{level = 10 : i32, message = "hqd,hkd->hqk"}> : () -> ()
      %cst = arith.constant dense<0.000000e+00> : vector<4x16x16xf32>
      %19 = tpu.matmul %16, %18, %cst {dimension_numbers = #tpu.dot_dimension_numbers<[2], [2], [1], [1], [0, 0, 0, 1, 1, 1], [0], [0]>} : vector<4x16x128xbf16>, vector<4x16x128xbf16>, vector<4x16x16xf32> -> vector<4x16x16xf32>
      "tpu.trace_stop"() : () -> ()
      %c0_13 = arith.constant 0 : index
      %c0_14 = arith.constant 0 : index
      %c0_15 = arith.constant 0 : index
      %20 = vector.load %arg4[%c0_13, %c0_14, %c0_15] : memref<1x16x16xbf16, #tpu.memory_space<vmem>>, vector<1x16x16xbf16>
      %21 = vector.shape_cast %20 : vector<1x16x16xbf16> to vector<16x16xbf16>
      %22 = arith.extf %21 : vector<16x16xbf16> to vector<16x16xf32>
      %23 = vector.shape_cast %22 : vector<16x16xf32> to vector<1x16x16xf32>
      %24 = vector.broadcast %23 : vector<1x16x16xf32> to vector<4x16x16xf32>
      %25 = arith.addf %19, %24 : vector<4x16x16xf32>
      %c0_16 = arith.constant 0 : index
      %c0_17 = arith.constant 0 : index
      %c0_18 = arith.constant 0 : index
      %26 = vector.load %arg9[%c0_16, %c0_17, %c0_18] : memref<4x16x1xf32, #tpu.memory_space<vmem>>, vector<4x16x1xf32>
      %cst_19 = arith.constant dense<0xFF800000> : vector<4x16xf32>
      %27 = vector.multi_reduction <maximumf>, %25, %cst_19 [2] : vector<4x16x16xf32> to vector<4x16xf32>
      %28 = vector.shape_cast %27 : vector<4x16xf32> to vector<4x16x1xf32>
      %29 = arith.maximumf %26, %28 : vector<4x16x1xf32>
      %30 = arith.subf %26, %29 : vector<4x16x1xf32>
      %31 = math.exp %30 : vector<4x16x1xf32>
      %32 = vector.broadcast %29 : vector<4x16x1xf32> to vector<4x16x16xf32>
      %33 = arith.subf %25, %32 : vector<4x16x16xf32>
      %34 = math.exp %33 : vector<4x16x16xf32>
      %c0_20 = arith.constant 0 : index
      %c0_21 = arith.constant 0 : index
      %c0_22 = arith.constant 0 : index
      %35 = vector.load %arg10[%c0_20, %c0_21, %c0_22] : memref<4x16x1xf32, #tpu.memory_space<vmem>>, vector<4x16x1xf32>
      %36 = arith.mulf %31, %35 : vector<4x16x1xf32>
      %cst_23 = arith.constant dense<0.000000e+00> : vector<4x16xf32>
      %37 = vector.multi_reduction <add>, %34, %cst_23 [2] : vector<4x16x16xf32> to vector<4x16xf32>
      %38 = vector.shape_cast %37 : vector<4x16xf32> to vector<4x16x1xf32>
      %39 = arith.addf %36, %38 : vector<4x16x1xf32>
      %c0_24 = arith.constant 0 : index
      %c0_25 = arith.constant 0 : index
      %c0_26 = arith.constant 0 : index
      %40 = vector.load %arg10[%c0_24, %c0_25, %c0_26] : memref<4x16x1xf32, #tpu.memory_space<vmem>>, vector<4x16x1xf32>
      tpu.vector_store %arg10[%c0_24, %c0_25, %c0_26], %39 {strides = array<i32>} : memref<4x16x1xf32, #tpu.memory_space<vmem>>, vector<4x16x1xf32>,
      %c0_27 = arith.constant 0 : index
      %c0_28 = arith.constant 0 : index
      %c0_29 = arith.constant 0 : index
      %41 = vector.load %arg11[%c0_27, %c0_28, %c0_29] : memref<4x16x128xf32, #tpu.memory_space<vmem>>, vector<4x16x128xf32>
      %42 = vector.broadcast %31 : vector<4x16x1xf32> to vector<4x16x128xf32>
      %43 = arith.mulf %42, %41 : vector<4x16x128xf32>
      %44 = arith.truncf %34 : vector<4x16x16xf32> to vector<4x16x16xbf16>
      %c0_30 = arith.constant 0 : index
      %c0_31 = arith.constant 0 : index
      %c0_32 = arith.constant 0 : index
      %c0_33 = arith.constant 0 : index
      %45 = vector.load %arg7[%c0_30, %c0_31, %c0_32, %c0_33] : memref<1x4x16x128xbf16, #tpu.memory_space<vmem>>, vector<1x4x16x128xbf16>
      %46 = vector.shape_cast %45 : vector<1x4x16x128xbf16> to vector<4x16x128xbf16>
      "tpu.trace_start"() <{level = 10 : i32, message = "hqk,hkd->hqd"}> : () -> ()
      %cst_34 = arith.constant dense<0.000000e+00> : vector<4x16x128xf32>
      %47 = tpu.matmul %44, %46, %cst_34 {dimension_numbers = #tpu.dot_dimension_numbers<[2], [1], [1], [2], [0, 0, 0, 1, 1, 2], [0], [0]>} : vector<4x16x16xbf16>, vector<4x16x128xbf16>, vector<4x16x128xf32> -> vector<4x16x128xf32>
      "tpu.trace_stop"() : () -> ()
      %48 = arith.addf %43, %47 : vector<4x16x128xf32>
      %c0_35 = arith.constant 0 : index
      %c0_36 = arith.constant 0 : index
      %c0_37 = arith.constant 0 : index
      %49 = vector.load %arg11[%c0_35, %c0_36, %c0_37] : memref<4x16x128xf32, #tpu.memory_space<vmem>>, vector<4x16x128xf32>
      tpu.vector_store %arg11[%c0_35, %c0_36, %c0_37], %48 {strides = array<i32>} : memref<4x16x128xf32, #tpu.memory_space<vmem>>, vector<4x16x128xf32>,
      %c0_38 = arith.constant 0 : index
      %c0_39 = arith.constant 0 : index
      %c0_40 = arith.constant 0 : index
      %50 = vector.load %arg9[%c0_38, %c0_39, %c0_40] : memref<4x16x1xf32, #tpu.memory_space<vmem>>, vector<4x16x1xf32>
      tpu.vector_store %arg9[%c0_38, %c0_39, %c0_40], %29 {strides = array<i32>} : memref<4x16x1xf32, #tpu.memory_space<vmem>>, vector<4x16x1xf32>,
    } else {
    }
    %c0_i32_4 = arith.constant 0 : i32
    %12 = arith.cmpi eq, %arg2, %c0_i32_4 : i32
    %13 = arith.extui %12 : i1 to i32
    %c0_i32_5 = arith.constant 0 : i32
    %14 = arith.cmpi ne, %13, %c0_i32_5 : i32
    scf.if %14 {
      %c0 = arith.constant 0 : index
      %c0_6 = arith.constant 0 : index
      %c0_7 = arith.constant 0 : index
      %15 = vector.load %arg10[%c0, %c0_6, %c0_7] : memref<4x16x1xf32, #tpu.memory_space<vmem>>, vector<4x16x1xf32>
      %16 = tpu.reciprocal %15 {approx = true} : vector<4x16x1xf32> -> vector<4x16x1xf32>
      %c0_8 = arith.constant 0 : index
      %c0_9 = arith.constant 0 : index
      %c0_10 = arith.constant 0 : index
      %17 = vector.load %arg11[%c0_8, %c0_9, %c0_10] : memref<4x16x128xf32, #tpu.memory_space<vmem>>, vector<4x16x128xf32>
      %18 = vector.broadcast %16 : vector<4x16x1xf32> to vector<4x16x128xf32>
      %19 = arith.mulf %17, %18 : vector<4x16x128xf32>
      %20 = arith.truncf %19 : vector<4x16x128xf32> to vector<4x16x128xbf16>
      %c0_11 = arith.constant 0 : index
      %c0_12 = arith.constant 0 : index
      %c0_13 = arith.constant 0 : index
      %c0_14 = arith.constant 0 : index
      %21 = vector.load %arg8[%c0_11, %c0_12, %c0_13, %c0_14] : memref<1x4x16x128xbf16, #tpu.memory_space<vmem>>, vector<1x4x16x128xbf16>
      %22 = vector.shape_cast %21 : vector<1x4x16x128xbf16> to vector<4x16x128xbf16>
      %23 = vector.shape_cast %20 : vector<4x16x128xbf16> to vector<1x4x16x128xbf16>
      tpu.vector_store %arg8[%c0_11, %c0_12, %c0_13, %c0_14], %23 {strides = array<i32>} : memref<1x4x16x128xbf16, #tpu.memory_space<vmem>>, vector<1x4x16x128xbf16>,
    } else {
    }
    return
  }
  func.func @transform_0(%arg0: i32, %arg1: i32, %arg2: i32, %arg3: memref<2xi32, #tpu.memory_space<smem>>) -> (i32, i32, i32) {
    %c0_i32 = arith.constant 0 : i32
    %c0_i32_0 = arith.constant 0 : i32
    return %c0_i32, %arg1, %arg2 : i32, i32, i32
  }
  func.func @transform_1(%arg0: i32, %arg1: i32, %arg2: i32, %arg3: memref<2xi32, #tpu.memory_space<smem>>) -> (i32, i32, i32, i32) {
    %c0_i32 = arith.constant 0 : i32
    %c0_i32_0 = arith.constant 0 : i32
    %c0_i32_1 = arith.constant 0 : i32
    return %arg0, %c0_i32, %arg1, %c0_i32_0 : i32, i32, i32, i32
  }
  func.func @transform_2(%arg0: i32, %arg1: i32, %arg2: i32, %arg3: memref<2xi32, #tpu.memory_space<smem>>) -> (i32, i32, i32, i32) {
    %c0_i32 = arith.constant 0 : i32
    %c0_i32_0 = arith.constant 0 : i32
    %c0_i32_1 = arith.constant 0 : i32
    return %arg0, %c0_i32, %arg2, %c0_i32_0 : i32, i32, i32, i32
  }
  func.func @transform_3(%arg0: i32, %arg1: i32, %arg2: i32, %arg3: memref<2xi32, #tpu.memory_space<smem>>) -> (i32, i32, i32, i32) {
    %c0_i32 = arith.constant 0 : i32
    %c0_i32_0 = arith.constant 0 : i32
    %c0_i32_1 = arith.constant 0 : i32
    return %arg0, %c0_i32, %arg2, %c0_i32_0 : i32, i32, i32, i32
  }
  func.func @transform_4(%arg0: i32, %arg1: i32, %arg2: i32, %arg3: memref<2xi32, #tpu.memory_space<smem>>) -> (i32, i32, i32, i32) {
    %c0_i32 = arith.constant 0 : i32
    %c0_i32_0 = arith.constant 0 : i32
    %c0_i32_1 = arith.constant 0 : i32
    return %arg0, %c0_i32, %arg1, %c0_i32_0 : i32, i32, i32, i32
  }
}

</mosaic_0001>

<llo_original>
// kernel: tpu_custom_call.1
$region0: #{tpu_custom_call.1}
  #allocation0 [shape = 'u32[]', space=smem, size = 0x4, offset = 0x4, fixed_abs, tag = 'smem constant byte address 0x4 - core index']
  #allocation1 [shape = 'u32[144,128]{1,0:T(1,128)}', space=vmem, size = 0x12000, scoped, tag = 'internal scratch']
  #allocation2 [shape = 'f32[4,16,1]{2,1,0:T(8,128)}', space=vmem, size = 0x8000, scoped, tag = 'scratch operand']
  #allocation3 [shape = 'f32[4,16,1]{2,1,0:T(8,128)}', space=vmem, size = 0x8000, scoped, tag = 'scratch operand']
  #allocation4 [shape = 'f32[4,16,128]{2,1,0:T(8,128)}', space=vmem, size = 0x8000, scoped, tag = 'scratch operand']
  #allocation5 [shape = 's32[1]{0}', space=sflag, size = 0x4, scoped, tag = 'scoped memory for tpu_custom_call.1']
  #allocation6 [shape = 'u8[512]{0}', space=smem, size = 0x200, scoped, tag = 'prefetched SMEM operand 0']
  %s0 = inlined_call_operand.hbm [shape: s32[2], index: 0, kind: input, shape index: {}]
  %s1 = inlined_call_operand.hbm [shape: bf16[1,16,16], index: 1, kind: input, shape index: {}]
  %s2 = inlined_call_operand.hbm [shape: bf16[2,4,16,128], index: 2, kind: input, shape index: {}]
  %s3 = inlined_call_operand.hbm [shape: bf16[2,4,16,128], index: 3, kind: input, shape index: {}]
  %s4 = inlined_call_operand.hbm [shape: bf16[2,4,16,128], index: 4, kind: input, shape index: {}]
  %s5 = inlined_call_operand.hbm [shape: bf16[2,4,16,128], index: 5, kind: output, shape index: {}]
  %s6 = sld [smem:[#allocation0]]
  $region77: #{tpu_custom_call.1} parent=0
    _
  %s8 = ssub.s32 1, %s6
  %s9 = scalar_select 0, %s8, %s6
  %11 = dma.hbm_to_smem %s0, 16, [#allocation6], [#allocation5]
  %12 = dma.done [#allocation5], 16
  %13 = sfence
  $region1: #{tpu_custom_call.1} parent=0
    #allocation7 [shape = 'u8[4096]{0}', space=vmem, size = 0x1000, scoped, tag = 'input window, operand 1, single buffered']
    #allocation8 [shape = 's32[2]{0}', space=sflag, size = 0x8, scoped, tag = 'scoped memory for tpu_custom_call.1']
    #allocation9 [shape = 's32[2]{0}', space=sflag, size = 0x8, scoped, tag = 'scoped memory for tpu_custom_call.1']
    #allocation10 [shape = 'u8[32768]{0}', space=vmem, size = 0x8000, scoped, tag = 'input window, operand 2']
    #allocation11 [shape = 's32[2]{0}', space=sflag, size = 0x8, scoped, tag = 'scoped memory for tpu_custom_call.1']
    #allocation12 [shape = 'u8[32768]{0}', space=vmem, size = 0x8000, scoped, tag = 'input window, operand 3']
    #allocation13 [shape = 'u8[32768]{0}', space=vmem, size = 0x8000, scoped, tag = 'input window, operand 4']
    #allocation14 [shape = 's32[2]{0}', space=sflag, size = 0x8, scoped, tag = 'scoped memory for tpu_custom_call.1']
    #allocation15 [shape = 'u8[32768]{0}', space=vmem, size = 0x8000, scoped, tag = 'output window, operand 0']
    %14 = vsyncpa [#allocation8], 0
    %15 = vsyncpa [#allocation11], 0
    %s16 = scalar_lea.sflag [#allocation11], 1
    %17 = vsyncpa %s16, 0
    %18 = vsyncpa [#allocation14], 0
    %s19 = scalar_lea.sflag [#allocation14], 1
    %20 = vsyncpa %s19, 0
    %21 = vsyncpa [#allocation9], 0
    %s22 = scalar_lea.sflag [#allocation9], 1
    %23 = vsyncpa %s22, 0
    loop: start=0, step=1, limit=4
    $region2: #{tpu_custom_call.1} parent=1 // loop_pre_header
      _
    $region3: #{tpu_custom_call.1} parent=1 // loop_header
      %s25 = sphi 0, %s29
      %p26 = scmp.ge.s32.totalorder %s25, 4
      %s32 = sphi 0, %s51
      %s33 = sphi 0, %s47
      %s34 = sphi 0, %s43
      %s35 = sphi 0, %s32
      %s36 = sphi 0, %s33
      %s37 = sphi 0, %s34
      %s38 = sphi 0, %s35
      %s39 = sphi 0, %s36
      %s40 = sphi 0, %s37
      %s56 = sphi 0, %s58
      %s59 = sphi 0, %s56
      %s60 = sphi 0, %s59
      %s76 = sphi 0, %s60
      %s84 = sphi 0, %s86
      %s87 = sphi 0, %s84
      %s88 = sphi 0, %s87
      %s104 = sphi 0, %s88
      %s112 = sphi 0, %s114
      %s115 = sphi 0, %s112
      %s116 = sphi 0, %s115
      %s132 = sphi 0, %s116
      %s140 = sphi 0, %s142
      %s143 = sphi 0, %s140
      %s144 = sphi 0, %s143
      %s160 = sphi 0, %s144
      %s168 = sphi 0, %s170
      %s171 = sphi 0, %s168
      %s172 = sphi 0, %s171
      %s188 = sphi 0, %s172
    $region4: #{tpu_custom_call.1} parent=1 // loop_header_branch
      %28 = sbr.rel (%p26) target = $region8
    $region5: #{tpu_custom_call.1} parent=1 // loop_body
      %s30 = ssub.s32 %s25, 1
      %s31 = ssub.s32 %s25, 2
      %s41 = sadd.s32 1, %s34
      %p42 = scmp.ge.s32.totalorder %s41, 1
      %s43 = scalar_select %p42, 0, %s41
      %s44 = sadd.s32 1, %s33
      %s45 = scalar_select %p42, %s44, %s33
      %p46 = scmp.ge.s32.totalorder %s45, 1
      %s47 = scalar_select %p46, 0, %s45
      %s48 = sadd.s32 1, %s32
      %s49 = scalar_select %p46, %s48, %s32
      %p50 = scmp.ge.s32.totalorder %s49, 2
      %s51 = scalar_select %p50, 0, %s49
      %s52 = ssub.s32 %s33, %s47
      %s53 = ssub.s32 %s34, %s43
      %s54 = sor.u32 %s52, %s53
      %p55 = scmp.eq.s32.totalorder %s54, 0
      %s57 = sadd.s32 %s56, 1
      %s58 = scalar_select %p55, %s56, %s57
      %p61 = pneg %p55
      %p62 = scmp.eq.s32.totalorder %s25, 1
      %p63 = por %p61, %p62
      %p64 = scmp.ne.s32.totalorder %s56, %s59
      %p65 = scmp.eq.s32.totalorder %s25, 0
      %p66 = por %p64, %p65
      %p67 = scmp.ne.s32.totalorder %s56, %s59
      %p68 = scmp.eq.s32.totalorder %s30, 1
      %p69 = por %p67, %p68
      %p70 = scmp.ne.s32.totalorder %s59, %s60
      %p71 = scmp.eq.s32.totalorder %s30, 0
      %p72 = por %p70, %p71
      %p73 = scmp.ne.s32.totalorder %s59, %s60
      %p74 = scmp.eq.s32.totalorder %s31, 1
      %p75 = por %p73, %p74
      %p77 = scmp.ne.s32.totalorder %s60, %s76
      %p78 = scmp.eq.s32.totalorder %s31, 0
      %p79 = por %p77, %p78
      %s80 = ssub.s32 %s32, %s51
      %s81 = ssub.s32 %s33, %s47
      %s82 = sor.u32 %s80, %s81
      %p83 = scmp.eq.s32.totalorder %s82, 0
      %s85 = sadd.s32 %s84, 1
      %s86 = scalar_select %p83, %s84, %s85
      %p89 = pneg %p83
      %p90 = scmp.eq.s32.totalorder %s25, 1
      %p91 = por %p89, %p90
      %p92 = scmp.ne.s32.totalorder %s84, %s87
      %p93 = scmp.eq.s32.totalorder %s25, 0
      %p94 = por %p92, %p93
      %p95 = scmp.ne.s32.totalorder %s84, %s87
      %p96 = scmp.eq.s32.totalorder %s30, 1
      %p97 = por %p95, %p96
      %p98 = scmp.ne.s32.totalorder %s87, %s88
      %p99 = scmp.eq.s32.totalorder %s30, 0
      %p100 = por %p98, %p99
      %p101 = scmp.ne.s32.totalorder %s87, %s88
      %p102 = scmp.eq.s32.totalorder %s31, 1
      %p103 = por %p101, %p102
      %p105 = scmp.ne.s32.totalorder %s88, %s104
      %p106 = scmp.eq.s32.totalorder %s31, 0
      %p107 = por %p105, %p106
      %s108 = ssub.s32 %s32, %s51
      %s109 = ssub.s32 %s34, %s43
      %s110 = sor.u32 %s108, %s109
      %p111 = scmp.eq.s32.totalorder %s110, 0
      %s113 = sadd.s32 %s112, 1
      %s114 = scalar_select %p111, %s112, %s113
      %p117 = pneg %p111
      %p118 = scmp.eq.s32.totalorder %s25, 1
      %p119 = por %p117, %p118
      %p120 = scmp.ne.s32.totalorder %s112, %s115
      %p121 = scmp.eq.s32.totalorder %s25, 0
      %p122 = por %p120, %p121
      %p123 = scmp.ne.s32.totalorder %s112, %s115
      %p124 = scmp.eq.s32.totalorder %s30, 1
      %p125 = por %p123, %p124
      %p126 = scmp.ne.s32.totalorder %s115, %s116
      %p127 = scmp.eq.s32.totalorder %s30, 0
      %p128 = por %p126, %p127
      %p129 = scmp.ne.s32.totalorder %s115, %s116
      %p130 = scmp.eq.s32.totalorder %s31, 1
      %p131 = por %p129, %p130
      %p133 = scmp.ne.s32.totalorder %s116, %s132
      %p134 = scmp.eq.s32.totalorder %s31, 0
      %p135 = por %p133, %p134
      %s136 = ssub.s32 %s32, %s51
      %s137 = ssub.s32 %s34, %s43
      %s138 = sor.u32 %s136, %s137
      %p139 = scmp.eq.s32.totalorder %s138, 0
      %s141 = sadd.s32 %s140, 1
      %s142 = scalar_select %p139, %s140, %s141
      %p145 = pneg %p139
      %p146 = scmp.eq.s32.totalorder %s25, 1
      %p147 = por %p145, %p146
      %p148 = scmp.ne.s32.totalorder %s140, %s143
      %p149 = scmp.eq.s32.totalorder %s25, 0
      %p150 = por %p148, %p149
      %p151 = scmp.ne.s32.totalorder %s140, %s143
      %p152 = scmp.eq.s32.totalorder %s30, 1
      %p153 = por %p151, %p152
      %p154 = scmp.ne.s32.totalorder %s143, %s144
      %p155 = scmp.eq.s32.totalorder %s30, 0
      %p156 = por %p154, %p155
      %p157 = scmp.ne.s32.totalorder %s143, %s144
      %p158 = scmp.eq.s32.totalorder %s31, 1
      %p159 = por %p157, %p158
      %p161 = scmp.ne.s32.totalorder %s144, %s160
      %p162 = scmp.eq.s32.totalorder %s31, 0
      %p163 = por %p161, %p162
      %s164 = ssub.s32 %s32, %s51
      %s165 = ssub.s32 %s33, %s47
      %s166 = sor.u32 %s164, %s165
      %p167 = scmp.eq.s32.totalorder %s166, 0
      %s169 = sadd.s32 %s168, 1
      %s170 = scalar_select %p167, %s168, %s169
      %p173 = pneg %p167
      %p174 = scmp.eq.s32.totalorder %s25, 1
      %p175 = por %p173, %p174
      %p176 = scmp.ne.s32.totalorder %s168, %s171
      %p177 = scmp.eq.s32.totalorder %s25, 0
      %p178 = por %p176, %p177
      %p179 = scmp.ne.s32.totalorder %s168, %s171
      %p180 = scmp.eq.s32.totalorder %s30, 1
      %p181 = por %p179, %p180
      %p182 = scmp.ne.s32.totalorder %s171, %s172
      %p183 = scmp.eq.s32.totalorder %s30, 0
      %p184 = por %p182, %p183
      %p185 = scmp.ne.s32.totalorder %s171, %s172
      %p186 = scmp.eq.s32.totalorder %s31, 1
      %p187 = por %p185, %p186
      %p189 = scmp.ne.s32.totalorder %s172, %s188
      %p190 = scmp.eq.s32.totalorder %s31, 0
      %p191 = por %p189, %p190
      %p192 = scmp.le.s32.totalorder 1, %s25
      %p193 = scmp.lt.s32.totalorder %s25, 3
      %p194 = pnand %p192, %p193
      %p195 = pneg %p194
      // Predicated region
      $region9: #{tpu_custom_call.1} parent=5 // pred_check
        _
      $region10: #{tpu_custom_call.1} parent=5 // pred_check_branch
        %197 = sbr.rel (%p194) target = $region12
      $region11: #{tpu_custom_call.1} parent=5 // pred_region
        %s198 = ssub.s32 %s25, 1
        // Predicated region
        $region13: #{tpu_custom_call.1} parent=11 // pred_check
          %p199 = pneg %p72
        $region14: #{tpu_custom_call.1} parent=11 // pred_check_branch
          %201 = sbr.rel (%p199) target = $region16
        $region15: #{tpu_custom_call.1} parent=11 // pred_region
          %s202 = smul.u32 2, %s36
          %s204 = ssub.s32 128, 128
          %205 = vsyncadd [#allocation8], %s204
          %s206 = sadd.s32 %s37, %s202
          %s207 = smul.addr %s206, 64
          %s208 = scalar_lea.hbm %s1, %s207
          %s209 = sshll.u32 [#allocation7], 4
          %s210 = int_to_ptr.vmem [resolvable:$true] %s209
          %215 = dma.hbm_to_vmem [thread:$0]  %s208, 128, %s210, [#allocation8], 64, 64, 4
        $region16: #{tpu_custom_call.1} parent=11 // pred_fallthru
          _
      $region12: #{tpu_custom_call.1} parent=5 // pred_fallthru
        _
      %p216 = scmp.lt.s32.totalorder %s25, 2
      // Predicated region
      $region17: #{tpu_custom_call.1} parent=5 // pred_check
        %p217 = pneg %p216
      $region18: #{tpu_custom_call.1} parent=5 // pred_check_branch
        %219 = sbr.rel (%p217) target = $region20
      $region19: #{tpu_custom_call.1} parent=5 // pred_region
        // Predicated region
        $region21: #{tpu_custom_call.1} parent=19 // pred_check
          %p220 = pneg %p94
        $region22: #{tpu_custom_call.1} parent=19 // pred_check_branch
          %222 = sbr.rel (%p220) target = $region24
        $region23: #{tpu_custom_call.1} parent=19 // pred_region
          %s223 = sand.u32 %s25, 1
          %s224 = scalar_lea.sflag [#allocation11], %s223
          %s225 = sand.u32 %s84, 1
          %s226 = smul.addr %s225, 32
          %s227 = scalar_lea.vmem [#allocation10], %s226
          %s228 = smul.u32 2, %s33
          %s230 = ssub.s32 512, 512
          %231 = vsyncadd %s224, %s230
          %s232 = smul.addr %s32, 8
          %s233 = sadd.s32 %s228, %s232
          %s234 = smul.addr %s233, 64
          %s235 = scalar_lea.hbm %s2, %s234
          %s236 = sshll.u32 %s227, 4
          %s237 = int_to_ptr.vmem [resolvable:$true] %s236
          %242 = dma.hbm_to_vmem [thread:$0]  %s235, 512, %s237, %s224, 64, 64, 4
        $region24: #{tpu_custom_call.1} parent=19 // pred_fallthru
          _
        // Predicated region
        $region25: #{tpu_custom_call.1} parent=19 // pred_check
          %p243 = pneg %p122
        $region26: #{tpu_custom_call.1} parent=19 // pred_check_branch
          %245 = sbr.rel (%p243) target = $region28
        $region27: #{tpu_custom_call.1} parent=19 // pred_region
          %s246 = sand.u32 %s25, 1
          %s247 = scalar_lea.sflag [#allocation11], %s246
          %s248 = sand.u32 %s112, 1
          %s249 = smul.addr %s248, 32
          %s250 = scalar_lea.vmem [#allocation12], %s249
          %s251 = smul.u32 2, %s34
          %s253 = ssub.s32 512, 512
          %254 = vsyncadd %s247, %s253
          %s255 = smul.addr %s32, 8
          %s256 = sadd.s32 %s251, %s255
          %s257 = smul.addr %s256, 64
          %s258 = scalar_lea.hbm %s3, %s257
          %s259 = sshll.u32 %s250, 4
          %s260 = int_to_ptr.vmem [resolvable:$true] %s259
          %265 = dma.hbm_to_vmem [thread:$0]  %s258, 512, %s260, %s247, 64, 64, 4
        $region28: #{tpu_custom_call.1} parent=19 // pred_fallthru
          _
        // Predicated region
        $region29: #{tpu_custom_call.1} parent=19 // pred_check
          %p266 = pneg %p150
        $region30: #{tpu_custom_call.1} parent=19 // pred_check_branch
          %268 = sbr.rel (%p266) target = $region32
        $region31: #{tpu_custom_call.1} parent=19 // pred_region
          %s269 = sand.u32 %s140, 1
          %s270 = scalar_lea.sflag [#allocation14], %s269
          %s271 = sand.u32 %s140, 1
          %s272 = smul.addr %s271, 32
          %s273 = scalar_lea.vmem [#allocation13], %s272
          %s274 = smul.u32 2, %s34
          %s276 = ssub.s32 512, 512
          %277 = vsyncadd %s270, %s276
          %s278 = smul.addr %s32, 8
          %s279 = sadd.s32 %s274, %s278
          %s280 = smul.addr %s279, 64
          %s281 = scalar_lea.hbm %s4, %s280
          %s282 = sshll.u32 %s273, 4
          %s283 = int_to_ptr.vmem [resolvable:$true] %s282
          %288 = dma.hbm_to_vmem [thread:$0]  %s281, 512, %s283, %s270, 64, 64, 4
        $region32: #{tpu_custom_call.1} parent=19 // pred_fallthru
          _
      $region20: #{tpu_custom_call.1} parent=5 // pred_fallthru
        _
      %p289 = scmp.le.s32.totalorder 1, %s25
      %p290 = scmp.lt.s32.totalorder %s25, 3
      %p291 = pnand %p289, %p290
      %p292 = pneg %p291
      // Predicated region
      $region33: #{tpu_custom_call.1} parent=5 // pred_check
        _
      $region34: #{tpu_custom_call.1} parent=5 // pred_check_branch
        %294 = sbr.rel (%p291) target = $region36
      $region35: #{tpu_custom_call.1} parent=5 // pred_region
        %s295 = ssub.s32 %s25, 1
        // Predicated region
        $region37: #{tpu_custom_call.1} parent=35 // pred_check
          %p296 = pneg %p72
        $region38: #{tpu_custom_call.1} parent=35 // pred_check_branch
          %298 = sbr.rel (%p296) target = $region40
        $region39: #{tpu_custom_call.1} parent=35 // pred_region
          %299 = dma.done [#allocation8], 128
        $region40: #{tpu_custom_call.1} parent=35 // pred_fallthru
          _
        %s300 = sand.u32 %s30, 1
        %s301 = scalar_lea.sflag [#allocation11], %s300
        %s302 = sand.u32 %s87, 1
        %s303 = smul.addr %s302, 32
        %s304 = scalar_lea.vmem [#allocation10], %s303
        // Predicated region
        $region41: #{tpu_custom_call.1} parent=35 // pred_check
          %p305 = pneg %p100
        $region42: #{tpu_custom_call.1} parent=35 // pred_check_branch
          %307 = sbr.rel (%p305) target = $region44
        $region43: #{tpu_custom_call.1} parent=35 // pred_region
          %308 = dma.done %s301, 512
        $region44: #{tpu_custom_call.1} parent=35 // pred_fallthru
          _
        %s309 = sand.u32 %s30, 1
        %s310 = scalar_lea.sflag [#allocation11], %s309
        %s311 = sand.u32 %s115, 1
        %s312 = smul.addr %s311, 32
        %s313 = scalar_lea.vmem [#allocation12], %s312
        // Predicated region
        $region45: #{tpu_custom_call.1} parent=35 // pred_check
          %p314 = pneg %p128
        $region46: #{tpu_custom_call.1} parent=35 // pred_check_branch
          %316 = sbr.rel (%p314) target = $region48
        $region47: #{tpu_custom_call.1} parent=35 // pred_region
          %317 = dma.done %s310, 512
        $region48: #{tpu_custom_call.1} parent=35 // pred_fallthru
          _
        %s318 = sand.u32 %s143, 1
        %s319 = scalar_lea.sflag [#allocation14], %s318
        %s320 = sand.u32 %s143, 1
        %s321 = smul.addr %s320, 32
        %s322 = scalar_lea.vmem [#allocation13], %s321
        // Predicated region
        $region49: #{tpu_custom_call.1} parent=35 // pred_check
          %p323 = pneg %p156
        $region50: #{tpu_custom_call.1} parent=35 // pred_check_branch
          %325 = sbr.rel (%p323) target = $region52
        $region51: #{tpu_custom_call.1} parent=35 // pred_region
          %326 = dma.done %s319, 512
        $region52: #{tpu_custom_call.1} parent=35 // pred_fallthru
          _
        %p327 = pneg %p72
        %p328 = pneg %p69
        %s329 = sand.u32 %s30, 1
        %s330 = scalar_lea.sflag [#allocation11], %s329
        %s331 = sand.u32 %s87, 1
        %s332 = smul.addr %s331, 32
        %s333 = scalar_lea.vmem [#allocation10], %s332
        %p334 = pneg %p100
        %p335 = pneg %p97
        %s336 = sand.u32 %s30, 1
        %s337 = scalar_lea.sflag [#allocation11], %s336
        %s338 = sand.u32 %s115, 1
        %s339 = smul.addr %s338, 32
        %s340 = scalar_lea.vmem [#allocation12], %s339
        %p341 = pneg %p128
        %p342 = pneg %p125
        %s343 = sand.u32 %s143, 1
        %s344 = scalar_lea.sflag [#allocation14], %s343
        %s345 = sand.u32 %s143, 1
        %s346 = smul.addr %s345, 32
        %s347 = scalar_lea.vmem [#allocation13], %s346
        %p348 = pneg %p156
        %p349 = pneg %p153
        %p350 = pneg %p184
        %p351 = pneg %p181
        %s352 = sand.u32 %s171, 1
        %s353 = scalar_lea.sflag [#allocation9], %s352
        %s354 = sand.u32 %s171, 1
        %s355 = smul.addr %s354, 32
        %s356 = scalar_lea.vmem [#allocation15], %s355
        %s357 = smul.u32 2, %s36
        %s358 = smul.u32 2, %s36
        %s359 = smul.u32 2, %s37
        %s360 = smul.u32 2, %s37
        %s361 = smul.u32 2, %s36
        %p363 = scmp.eq.s32.totalorder %s37, 0
        // Predicated region
        $region53: #{tpu_custom_call.1} parent=35 // pred_check
          %p364 = pneg %p363
        $region54: #{tpu_custom_call.1} parent=35 // pred_check_branch
          %366 = sbr.rel (%p364) target = $region56
        $region55: #{tpu_custom_call.1} parent=35 // pred_region
          %vm367 = vcmask 7168
          %368 = vst.msk [vmem:[#allocation2] sm:$0xff] %vm367, -inf
          %369 = vst.msk [vmem:[#allocation2 + $0x8] sm:$0xff] %vm367, -inf
          %370 = vst.msk [vmem:[#allocation2 + $0x10] sm:$0xff] %vm367, -inf
          %371 = vst.msk [vmem:[#allocation2 + $0x18] sm:$0xff] %vm367, -inf
          %372 = vst.msk [vmem:[#allocation2 + $0x20] sm:$0xff] %vm367, -inf
          %373 = vst.msk [vmem:[#allocation2 + $0x28] sm:$0xff] %vm367, -inf
          %374 = vst.msk [vmem:[#allocation2 + $0x30] sm:$0xff] %vm367, -inf
          %375 = vst.msk [vmem:[#allocation2 + $0x38] sm:$0xff] %vm367, -inf
          %376 = vst.msk [vmem:[#allocation3] sm:$0xff] %vm367, 0.0
          %377 = vst.msk [vmem:[#allocation3 + $0x8] sm:$0xff] %vm367, 0.0
          %378 = vst.msk [vmem:[#allocation3 + $0x10] sm:$0xff] %vm367, 0.0
          %379 = vst.msk [vmem:[#allocation3 + $0x18] sm:$0xff] %vm367, 0.0
          %380 = vst.msk [vmem:[#allocation3 + $0x20] sm:$0xff] %vm367, 0.0
          %381 = vst.msk [vmem:[#allocation3 + $0x28] sm:$0xff] %vm367, 0.0
          %382 = vst.msk [vmem:[#allocation3 + $0x30] sm:$0xff] %vm367, 0.0
          %383 = vst.msk [vmem:[#allocation3 + $0x38] sm:$0xff] %vm367, 0.0
          %384 = vst [vmem:[#allocation4] sm:$0xff] 0.0
          %385 = vst [vmem:[#allocation4 + $0x8] sm:$0xff] 0.0
          %386 = vst [vmem:[#allocation4 + $0x10] sm:$0xff] 0.0
          %387 = vst [vmem:[#allocation4 + $0x18] sm:$0xff] 0.0
          %388 = vst [vmem:[#allocation4 + $0x20] sm:$0xff] 0.0
          %389 = vst [vmem:[#allocation4 + $0x28] sm:$0xff] 0.0
          %390 = vst [vmem:[#allocation4 + $0x30] sm:$0xff] 0.0
          %391 = vst [vmem:[#allocation4 + $0x38] sm:$0xff] 0.0
        $region56: #{tpu_custom_call.1} parent=35 // pred_fallthru
          _
        %s392 = sadd.s32 %s35, %s36
        %s393 = sadd.s32 %s392, %s37
        %s394 = sld [smem:[#allocation6 + %s393]]
        %p395 = scmp.ne.s32.totalorder %s394, 0
        // Predicated region
        $region57: #{tpu_custom_call.1} parent=35 // pred_check
          %p396 = pneg %p395
        $region58: #{tpu_custom_call.1} parent=35 // pred_check_branch
          %398 = sbr.rel (%p396) target = $region60
        $region59: #{tpu_custom_call.1} parent=35 // pred_region
          %v399 = vld [vmem:[%s304] sm:$0xf]
          %v400 = vld [vmem:[%s304 + $0x4] sm:$0xf]
          %v401 = vld [vmem:[%s304 + $0x8] sm:$0xf]
          %v402 = vld [vmem:[%s304 + $0xc] sm:$0xf]
          %v403 = vld [vmem:[%s304 + $0x10] sm:$0xf]
          %v404 = vld [vmem:[%s304 + $0x14] sm:$0xf]
          %v405 = vld [vmem:[%s304 + $0x18] sm:$0xf]
          %v406 = vld [vmem:[%s304 + $0x1c] sm:$0xf]
          %v407 = vld [vmem:[%s313] sm:$0xf]
          %v408 = vld [vmem:[%s313 + $0x4] sm:$0xf]
          %v409 = vld [vmem:[%s313 + $0x8] sm:$0xf]
          %v410 = vld [vmem:[%s313 + $0xc] sm:$0xf]
          %v411 = vld [vmem:[%s313 + $0x10] sm:$0xf]
          %v412 = vld [vmem:[%s313 + $0x14] sm:$0xf]
          %v413 = vld [vmem:[%s313 + $0x18] sm:$0xf]
          %v414 = vld [vmem:[%s313 + $0x1c] sm:$0xf]
          %v415 = vld [vmem:[#allocation7] sm:$0xf]
          %v416 = vld [vmem:[#allocation7 + $0x4] sm:$0xf]
          %v417 = vunpack.c.l.bf16 %v415
          %v418 = vunpack.c.l.bf16 %v416
          %v421 = vunpack.c.l.b16 %v399
          %v422 = vunpack.c.l.b16 %v400
          %v423 = vpack.c.b16 %v422, %v421
          %v427 = vunpack.c.l.b16 %v407
          %v428 = vunpack.c.l.b16 %v408
          %v429 = vpack.c.b16 %v428, %v427
          %431 = vmatprep.subr.bf16.mxu0 0
          %432 = vmatpush1.bf16.xpose.msra.mxu0 %v429
          %433 = vmatprep.subr.bf16.mxu0 0
          %434 = vmatpush1.bf16.xpose.msra.mxu0 0
          %435 = vmatprep.subr.bf16.mxu0 0
          %436 = vmatpush1.bf16.xpose.msra.mxu0 0
          %437 = vmatprep.subr.bf16.mxu0 0
          %438 = vmatpush1.bf16.xpose.msra.mxu0 0
          %439 = vmatprep.subr.bf16.mxu0 0
          %440 = vmatpush1.bf16.xpose.msra.mxu0 0
          %441 = vmatprep.subr.bf16.mxu0 0
          %442 = vmatpush1.bf16.xpose.msra.mxu0 0
          %443 = vmatprep.subr.bf16.mxu0 0
          %444 = vmatpush1.bf16.xpose.msra.mxu0 0
          %445 = vmatprep.subr.bf16.mxu0 0
          %446 = vmatpush1.bf16.xpose.msra.mxu0 0
          %447 = vmatprep.subr.bf16.mxu0 0
          %448 = vmatpush1.bf16.xpose.msra.mxu0 0
          %449 = vmatprep.subr.bf16.mxu0 0
          %450 = vmatpush1.bf16.xpose.msra.mxu0 0
          %451 = vmatprep.subr.bf16.mxu0 0
          %452 = vmatpush1.bf16.xpose.msra.mxu0 0
          %453 = vmatprep.subr.bf16.mxu0 0
          %454 = vmatpush1.bf16.xpose.msra.mxu0 0
          %455 = vmatprep.subr.bf16.mxu0 0
          %456 = vmatpush1.bf16.xpose.msra.mxu0 0
          %457 = vmatprep.subr.bf16.mxu0 0
          %458 = vmatpush1.bf16.xpose.msra.mxu0 0
          %459 = vmatprep.subr.bf16.mxu0 0
          %460 = vmatpush1.bf16.xpose.msra.mxu0 0
          %461 = vmatprep.subr.bf16.mxu0 0
          %462 = vmatpush1.bf16.xpose.msra.mxu0 0
          %463 = vmatprep.mubr.bf16.mxu0 0
          %464 = vmatmul.mubr.bf16.gmra.mrb[0].mxu0 %v423
          %v465 = vpop.f32.mrb[0].mxu0
          %v466 = vadd.f32 %v417, %v465
          %v467 = vpop.f32.mrb[0].mxu0
          %v468 = vpop.f32.mrb[0].mxu0
          %v469 = vadd.f32 %v418, %v468
          %v470 = vpop.f32.mrb[0].mxu0
          %471 = vdwg.mxu0
          %v474 = vunpack.c.l.b16 %v401
          %v475 = vunpack.c.l.b16 %v402
          %v476 = vpack.c.b16 %v475, %v474
          %v480 = vunpack.c.l.b16 %v409
          %v481 = vunpack.c.l.b16 %v410
          %v482 = vpack.c.b16 %v481, %v480
          %484 = vmatprep.subr.bf16.mxu0 0
          %485 = vmatpush1.bf16.xpose.msra.mxu0 %v482
          %486 = vmatprep.subr.bf16.mxu0 0
          %487 = vmatpush1.bf16.xpose.msra.mxu0 0
          %488 = vmatprep.subr.bf16.mxu0 0
          %489 = vmatpush1.bf16.xpose.msra.mxu0 0
          %490 = vmatprep.subr.bf16.mxu0 0
          %491 = vmatpush1.bf16.xpose.msra.mxu0 0
          %492 = vmatprep.subr.bf16.mxu0 0
          %493 = vmatpush1.bf16.xpose.msra.mxu0 0
          %494 = vmatprep.subr.bf16.mxu0 0
          %495 = vmatpush1.bf16.xpose.msra.mxu0 0
          %496 = vmatprep.subr.bf16.mxu0 0
          %497 = vmatpush1.bf16.xpose.msra.mxu0 0
          %498 = vmatprep.subr.bf16.mxu0 0
          %499 = vmatpush1.bf16.xpose.msra.mxu0 0
          %500 = vmatprep.subr.bf16.mxu0 0
          %501 = vmatpush1.bf16.xpose.msra.mxu0 0
          %502 = vmatprep.subr.bf16.mxu0 0
          %503 = vmatpush1.bf16.xpose.msra.mxu0 0
          %504 = vmatprep.subr.bf16.mxu0 0
          %505 = vmatpush1.bf16.xpose.msra.mxu0 0
          %506 = vmatprep.subr.bf16.mxu0 0
          %507 = vmatpush1.bf16.xpose.msra.mxu0 0
          %508 = vmatprep.subr.bf16.mxu0 0
          %509 = vmatpush1.bf16.xpose.msra.mxu0 0
          %510 = vmatprep.subr.bf16.mxu0 0
          %511 = vmatpush1.bf16.xpose.msra.mxu0 0
          %512 = vmatprep.subr.bf16.mxu0 0
          %513 = vmatpush1.bf16.xpose.msra.mxu0 0
          %514 = vmatprep.subr.bf16.mxu0 0
          %515 = vmatpush1.bf16.xpose.msra.mxu0 0
          %516 = vmatprep.mubr.bf16.mxu0 0
          %517 = vmatmul.mubr.bf16.gmra.mrb[0].mxu0 %v476
          %v518 = vpop.f32.mrb[0].mxu0
          %v519 = vadd.f32 %v417, %v518
          %v520 = vpop.f32.mrb[0].mxu0
          %v521 = vpop.f32.mrb[0].mxu0
          %v522 = vadd.f32 %v418, %v521
          %v523 = vpop.f32.mrb[0].mxu0
          %524 = vdwg.mxu0
          %v527 = vunpack.c.l.b16 %v403
          %v528 = vunpack.c.l.b16 %v404
          %v529 = vpack.c.b16 %v528, %v527
          %v533 = vunpack.c.l.b16 %v411
          %v534 = vunpack.c.l.b16 %v412
          %v535 = vpack.c.b16 %v534, %v533
          %537 = vmatprep.subr.bf16.mxu0 0
          %538 = vmatpush1.bf16.xpose.msra.mxu0 %v535
          %539 = vmatprep.subr.bf16.mxu0 0
          %540 = vmatpush1.bf16.xpose.msra.mxu0 0
          %541 = vmatprep.subr.bf16.mxu0 0
          %542 = vmatpush1.bf16.xpose.msra.mxu0 0
          %543 = vmatprep.subr.bf16.mxu0 0
          %544 = vmatpush1.bf16.xpose.msra.mxu0 0
          %545 = vmatprep.subr.bf16.mxu0 0
          %546 = vmatpush1.bf16.xpose.msra.mxu0 0
          %547 = vmatprep.subr.bf16.mxu0 0
          %548 = vmatpush1.bf16.xpose.msra.mxu0 0
          %549 = vmatprep.subr.bf16.mxu0 0
          %550 = vmatpush1.bf16.xpose.msra.mxu0 0
          %551 = vmatprep.subr.bf16.mxu0 0
          %552 = vmatpush1.bf16.xpose.msra.mxu0 0
          %553 = vmatprep.subr.bf16.mxu0 0
          %554 = vmatpush1.bf16.xpose.msra.mxu0 0
          %555 = vmatprep.subr.bf16.mxu0 0
          %556 = vmatpush1.bf16.xpose.msra.mxu0 0
          %557 = vmatprep.subr.bf16.mxu0 0
          %558 = vmatpush1.bf16.xpose.msra.mxu0 0
          %559 = vmatprep.subr.bf16.mxu0 0
          %560 = vmatpush1.bf16.xpose.msra.mxu0 0
          %561 = vmatprep.subr.bf16.mxu0 0
          %562 = vmatpush1.bf16.xpose.msra.mxu0 0
          %563 = vmatprep.subr.bf16.mxu0 0
          %564 = vmatpush1.bf16.xpose.msra.mxu0 0
          %565 = vmatprep.subr.bf16.mxu0 0
          %566 = vmatpush1.bf16.xpose.msra.mxu0 0
          %567 = vmatprep.subr.bf16.mxu0 0
          %568 = vmatpush1.bf16.xpose.msra.mxu0 0
          %569 = vmatprep.mubr.bf16.mxu0 0
          %570 = vmatmul.mubr.bf16.gmra.mrb[0].mxu0 %v529
          %v571 = vpop.f32.mrb[0].mxu0
          %v572 = vadd.f32 %v417, %v571
          %v573 = vpop.f32.mrb[0].mxu0
          %v574 = vpop.f32.mrb[0].mxu0
          %v575 = vadd.f32 %v418, %v574
          %v576 = vpop.f32.mrb[0].mxu0
          %577 = vdwg.mxu0
          %v580 = vunpack.c.l.b16 %v405
          %v581 = vunpack.c.l.b16 %v406
          %v582 = vpack.c.b16 %v581, %v580
          %v586 = vunpack.c.l.b16 %v413
          %v587 = vunpack.c.l.b16 %v414
          %v588 = vpack.c.b16 %v587, %v586
          %590 = vmatprep.subr.bf16.mxu0 0
          %591 = vmatpush1.bf16.xpose.msra.mxu0 %v588
          %592 = vmatprep.subr.bf16.mxu0 0
          %593 = vmatpush1.bf16.xpose.msra.mxu0 0
          %594 = vmatprep.subr.bf16.mxu0 0
          %595 = vmatpush1.bf16.xpose.msra.mxu0 0
          %596 = vmatprep.subr.bf16.mxu0 0
          %597 = vmatpush1.bf16.xpose.msra.mxu0 0
          %598 = vmatprep.subr.bf16.mxu0 0
          %599 = vmatpush1.bf16.xpose.msra.mxu0 0
          %600 = vmatprep.subr.bf16.mxu0 0
          %601 = vmatpush1.bf16.xpose.msra.mxu0 0
          %602 = vmatprep.subr.bf16.mxu0 0
          %603 = vmatpush1.bf16.xpose.msra.mxu0 0
          %604 = vmatprep.subr.bf16.mxu0 0
          %605 = vmatpush1.bf16.xpose.msra.mxu0 0
          %606 = vmatprep.subr.bf16.mxu0 0
          %607 = vmatpush1.bf16.xpose.msra.mxu0 0
          %608 = vmatprep.subr.bf16.mxu0 0
          %609 = vmatpush1.bf16.xpose.msra.mxu0 0
          %610 = vmatprep.subr.bf16.mxu0 0
          %611 = vmatpush1.bf16.xpose.msra.mxu0 0
          %612 = vmatprep.subr.bf16.mxu0 0
          %613 = vmatpush1.bf16.xpose.msra.mxu0 0
          %614 = vmatprep.subr.bf16.mxu0 0
          %615 = vmatpush1.bf16.xpose.msra.mxu0 0
          %616 = vmatprep.subr.bf16.mxu0 0
          %617 = vmatpush1.bf16.xpose.msra.mxu0 0
          %618 = vmatprep.subr.bf16.mxu0 0
          %619 = vmatpush1.bf16.xpose.msra.mxu0 0
          %620 = vmatprep.subr.bf16.mxu0 0
          %621 = vmatpush1.bf16.xpose.msra.mxu0 0
          %622 = vmatprep.mubr.bf16.mxu0 0
          %623 = vmatmul.mubr.bf16.gmra.mrb[0].mxu0 %v582
          %v624 = vpop.f32.mrb[0].mxu0
          %v625 = vadd.f32 %v417, %v624
          %v626 = vpop.f32.mrb[0].mxu0
          %v627 = vpop.f32.mrb[0].mxu0
          %v628 = vadd.f32 %v418, %v627
          %v629 = vpop.f32.mrb[0].mxu0
          %630 = vdwg.mxu0
          %v631 = vld [vmem:[#allocation2] sm:$0xff]
          %v632 = vld [vmem:[#allocation2 + $0x8] sm:$0xff]
          %v633 = vld [vmem:[#allocation2 + $0x10] sm:$0xff]
          %v634 = vld [vmem:[#allocation2 + $0x18] sm:$0xff]
          %v635 = vld [vmem:[#allocation2 + $0x20] sm:$0xff]
          %v636 = vld [vmem:[#allocation2 + $0x28] sm:$0xff]
          %v637 = vld [vmem:[#allocation2 + $0x30] sm:$0xff]
          %v638 = vld [vmem:[#allocation2 + $0x38] sm:$0xff]
          %vm639 = vcmask 130048
          %v640 = vsel %vm639, %v466, -inf
          %641 = vmax.xlane.f32.xlu0 %v640
          %v642 = vpop.xlane.xlu0 %641
          %v643 = vsel %vm639, %v469, -inf
          %644 = vmax.xlane.f32.xlu0 %v643
          %v645 = vpop.xlane.xlu0 %644
          %v646 = vsel %vm639, %v519, -inf
          %647 = vmax.xlane.f32.xlu0 %v646
          %v648 = vpop.xlane.xlu0 %647
          %v649 = vsel %vm639, %v522, -inf
          %650 = vmax.xlane.f32.xlu0 %v649
          %v651 = vpop.xlane.xlu0 %650
          %v652 = vsel %vm639, %v572, -inf
          %653 = vmax.xlane.f32.xlu0 %v652
          %v654 = vpop.xlane.xlu0 %653
          %v655 = vsel %vm639, %v575, -inf
          %656 = vmax.xlane.f32.xlu0 %v655
          %v657 = vpop.xlane.xlu0 %656
          %v658 = vsel %vm639, %v625, -inf
          %659 = vmax.xlane.f32.xlu0 %v658
          %v660 = vpop.xlane.xlu0 %659
          %v661 = vsel %vm639, %v628, -inf
          %662 = vmax.xlane.f32.xlu0 %v661
          %v663 = vpop.xlane.xlu0 %662
          %v664 = vmax.f32 %v631, %v642
          %v665 = vmax.f32 %v632, %v645
          %v666 = vmax.f32 %v633, %v648
          %v667 = vmax.f32 %v634, %v651
          %v668 = vmax.f32 %v635, %v654
          %v669 = vmax.f32 %v636, %v657
          %v670 = vmax.f32 %v637, %v660
          %v671 = vmax.f32 %v638, %v663
          %v672 = vsub.f32 %v631, %v664
          %v673 = vsub.f32 %v632, %v665
          %v674 = vsub.f32 %v633, %v666
          %v675 = vsub.f32 %v634, %v667
          %v676 = vsub.f32 %v635, %v668
          %v677 = vsub.f32 %v636, %v669
          %v678 = vsub.f32 %v637, %v670
          %v679 = vsub.f32 %v638, %v671
          %v680 = vmul.f32 %v672, 1.442695
          %v681 = vpow.pop %v680
          %v682 = vmul.f32 %v673, 1.442695
          %v683 = vpow.pop %v682
          %v684 = vmul.f32 %v674, 1.442695
          %v685 = vpow.pop %v684
          %v686 = vmul.f32 %v675, 1.442695
          %v687 = vpow.pop %v686
          %v688 = vmul.f32 %v676, 1.442695
          %v689 = vpow.pop %v688
          %v690 = vmul.f32 %v677, 1.442695
          %v691 = vpow.pop %v690
          %v692 = vmul.f32 %v678, 1.442695
          %v693 = vpow.pop %v692
          %v694 = vmul.f32 %v679, 1.442695
          %v695 = vpow.pop %v694
          %697 = vset.pattern.permute.xlu0 0
          %698 = vperm.xlu0 %697, %v664
          %v699 = vpop.permute.xlu0 %698
          %702 = vset.pattern.permute.xlu0 0
          %703 = vperm.xlu0 %702, %v665
          %v704 = vpop.permute.xlu0 %703
          %707 = vset.pattern.permute.xlu0 0
          %708 = vperm.xlu0 %707, %v666
          %v709 = vpop.permute.xlu0 %708
          %712 = vset.pattern.permute.xlu0 0
          %713 = vperm.xlu0 %712, %v667
          %v714 = vpop.permute.xlu0 %713
          %717 = vset.pattern.permute.xlu0 0
          %718 = vperm.xlu0 %717, %v668
          %v719 = vpop.permute.xlu0 %718
          %722 = vset.pattern.permute.xlu0 0
          %723 = vperm.xlu0 %722, %v669
          %v724 = vpop.permute.xlu0 %723
          %727 = vset.pattern.permute.xlu0 0
          %728 = vperm.xlu0 %727, %v670
          %v729 = vpop.permute.xlu0 %728
          %732 = vset.pattern.permute.xlu0 0
          %733 = vperm.xlu0 %732, %v671
          %v734 = vpop.permute.xlu0 %733
          %v736 = vsub.f32 %v466, %v699
          %v737 = vsub.f32 %v469, %v704
          %v738 = vsub.f32 %v519, %v709
          %v739 = vsub.f32 %v522, %v714
          %v740 = vsub.f32 %v572, %v719
          %v741 = vsub.f32 %v575, %v724
          %v742 = vsub.f32 %v625, %v729
          %v743 = vsub.f32 %v628, %v734
          %v744 = vmul.f32 %v736, 1.442695
          %v745 = vpow.pop %v744
          %v746 = vmul.f32 %v737, 1.442695
          %v747 = vpow.pop %v746
          %v748 = vmul.f32 %v738, 1.442695
          %v749 = vpow.pop %v748
          %v750 = vmul.f32 %v739, 1.442695
          %v751 = vpow.pop %v750
          %v752 = vmul.f32 %v740, 1.442695
          %v753 = vpow.pop %v752
          %v754 = vmul.f32 %v741, 1.442695
          %v755 = vpow.pop %v754
          %v756 = vmul.f32 %v742, 1.442695
          %v757 = vpow.pop %v756
          %v758 = vmul.f32 %v743, 1.442695
          %v759 = vpow.pop %v758
          %v760 = vld [vmem:[#allocation3] sm:$0xff]
          %v761 = vld [vmem:[#allocation3 + $0x8] sm:$0xff]
          %v762 = vld [vmem:[#allocation3 + $0x10] sm:$0xff]
          %v763 = vld [vmem:[#allocation3 + $0x18] sm:$0xff]
          %v764 = vld [vmem:[#allocation3 + $0x20] sm:$0xff]
          %v765 = vld [vmem:[#allocation3 + $0x28] sm:$0xff]
          %v766 = vld [vmem:[#allocation3 + $0x30] sm:$0xff]
          %v767 = vld [vmem:[#allocation3 + $0x38] sm:$0xff]
          %v768 = vmul.f32 %v681, %v760
          %v769 = vmul.f32 %v683, %v761
          %v770 = vmul.f32 %v685, %v762
          %v771 = vmul.f32 %v687, %v763
          %v772 = vmul.f32 %v689, %v764
          %v773 = vmul.f32 %v691, %v765
          %v774 = vmul.f32 %v693, %v766
          %v775 = vmul.f32 %v695, %v767
          %v776 = vsel %vm639, %v745, 0.0
          %777 = vadd.xlane.f32.xlu0 %v776
          %v778 = vpop.xlane.xlu0 %777
          %v779 = vsel %vm639, %v747, 0.0
          %780 = vadd.xlane.f32.xlu0 %v779
          %v781 = vpop.xlane.xlu0 %780
          %v782 = vsel %vm639, %v749, 0.0
          %783 = vadd.xlane.f32.xlu0 %v782
          %v784 = vpop.xlane.xlu0 %783
          %v785 = vsel %vm639, %v751, 0.0
          %786 = vadd.xlane.f32.xlu0 %v785
          %v787 = vpop.xlane.xlu0 %786
          %v788 = vsel %vm639, %v753, 0.0
          %789 = vadd.xlane.f32.xlu0 %v788
          %v790 = vpop.xlane.xlu0 %789
          %v791 = vsel %vm639, %v755, 0.0
          %792 = vadd.xlane.f32.xlu0 %v791
          %v793 = vpop.xlane.xlu0 %792
          %v794 = vsel %vm639, %v757, 0.0
          %795 = vadd.xlane.f32.xlu0 %v794
          %v796 = vpop.xlane.xlu0 %795
          %v797 = vsel %vm639, %v759, 0.0
          %798 = vadd.xlane.f32.xlu0 %v797
          %v799 = vpop.xlane.xlu0 %798
          %v800 = vadd.f32 %v768, %v778
          %v801 = vadd.f32 %v769, %v781
          %v802 = vadd.f32 %v770, %v784
          %v803 = vadd.f32 %v771, %v787
          %v804 = vadd.f32 %v772, %v790
          %v805 = vadd.f32 %v773, %v793
          %v806 = vadd.f32 %v774, %v796
          %v807 = vadd.f32 %v775, %v799
          %vm808 = vcmask 7168
          %809 = vst.msk [vmem:[#allocation3] sm:$0xff] %vm808, %v800
          %810 = vst.msk [vmem:[#allocation3 + $0x8] sm:$0xff] %vm808, %v801
          %811 = vst.msk [vmem:[#allocation3 + $0x10] sm:$0xff] %vm808, %v802
          %812 = vst.msk [vmem:[#allocation3 + $0x18] sm:$0xff] %vm808, %v803
          %813 = vst.msk [vmem:[#allocation3 + $0x20] sm:$0xff] %vm808, %v804
          %814 = vst.msk [vmem:[#allocation3 + $0x28] sm:$0xff] %vm808, %v805
          %815 = vst.msk [vmem:[#allocation3 + $0x30] sm:$0xff] %vm808, %v806
          %816 = vst.msk [vmem:[#allocation3 + $0x38] sm:$0xff] %vm808, %v807
          %v817 = vld [vmem:[#allocation4] sm:$0xff]
          %v818 = vld [vmem:[#allocation4 + $0x8] sm:$0xff]
          %v819 = vld [vmem:[#allocation4 + $0x10] sm:$0xff]
          %v820 = vld [vmem:[#allocation4 + $0x18] sm:$0xff]
          %v821 = vld [vmem:[#allocation4 + $0x20] sm:$0xff]
          %v822 = vld [vmem:[#allocation4 + $0x28] sm:$0xff]
          %v823 = vld [vmem:[#allocation4 + $0x30] sm:$0xff]
          %v824 = vld [vmem:[#allocation4 + $0x38] sm:$0xff]
          %826 = vset.pattern.permute.xlu0 0
          %827 = vperm.xlu0 %826, %v681
          %v828 = vpop.permute.xlu0 %827
          %831 = vset.pattern.permute.xlu0 0
          %832 = vperm.xlu0 %831, %v683
          %v833 = vpop.permute.xlu0 %832
          %836 = vset.pattern.permute.xlu0 0
          %837 = vperm.xlu0 %836, %v685
          %v838 = vpop.permute.xlu0 %837
          %841 = vset.pattern.permute.xlu0 0
          %842 = vperm.xlu0 %841, %v687
          %v843 = vpop.permute.xlu0 %842
          %846 = vset.pattern.permute.xlu0 0
          %847 = vperm.xlu0 %846, %v689
          %v848 = vpop.permute.xlu0 %847
          %851 = vset.pattern.permute.xlu0 0
          %852 = vperm.xlu0 %851, %v691
          %v853 = vpop.permute.xlu0 %852
          %856 = vset.pattern.permute.xlu0 0
          %857 = vperm.xlu0 %856, %v693
          %v858 = vpop.permute.xlu0 %857
          %861 = vset.pattern.permute.xlu0 0
          %862 = vperm.xlu0 %861, %v695
          %v863 = vpop.permute.xlu0 %862
          %v865 = vmul.f32 %v828, %v817
          %v866 = vmul.f32 %v833, %v818
          %v867 = vmul.f32 %v838, %v819
          %v868 = vmul.f32 %v843, %v820
          %v869 = vmul.f32 %v848, %v821
          %v870 = vmul.f32 %v853, %v822
          %v871 = vmul.f32 %v858, %v823
          %v872 = vmul.f32 %v863, %v824
          %v873 = vpack.c.bf16 %v747, %v745
          %v874 = vpack.c.bf16 %v751, %v749
          %v875 = vpack.c.bf16 %v755, %v753
          %v876 = vpack.c.bf16 %v759, %v757
          %v877 = vld [vmem:[%s322] sm:$0xf]
          %v878 = vld [vmem:[%s322 + $0x4] sm:$0xf]
          %v879 = vld [vmem:[%s322 + $0x8] sm:$0xf]
          %v880 = vld [vmem:[%s322 + $0xc] sm:$0xf]
          %v881 = vld [vmem:[%s322 + $0x10] sm:$0xf]
          %v882 = vld [vmem:[%s322 + $0x14] sm:$0xf]
          %v883 = vld [vmem:[%s322 + $0x18] sm:$0xf]
          %v884 = vld [vmem:[%s322 + $0x1c] sm:$0xf]
          %v887 = vunpack.c.l.b16 %v877
          %v888 = vunpack.c.l.b16 %v878
          %v889 = vpack.c.b16 %v888, %v887
          %v892 = vsel %vm639, %v873, 0
          %894 = vmatprep.subr.bf16.mxu0 0
          %895 = vmatpush1.bf16.msra.mxu0 %v889
          %896 = vmatprep.subr.bf16.mxu0 0
          %897 = vmatpush1.bf16.msra.mxu0 0
          %898 = vmatprep.subr.bf16.mxu0 0
          %899 = vmatpush1.bf16.msra.mxu0 0
          %900 = vmatprep.subr.bf16.mxu0 0
          %901 = vmatpush1.bf16.msra.mxu0 0
          %902 = vmatprep.subr.bf16.mxu0 0
          %903 = vmatpush1.bf16.msra.mxu0 0
          %904 = vmatprep.subr.bf16.mxu0 0
          %905 = vmatpush1.bf16.msra.mxu0 0
          %906 = vmatprep.subr.bf16.mxu0 0
          %907 = vmatpush1.bf16.msra.mxu0 0
          %908 = vmatprep.subr.bf16.mxu0 0
          %909 = vmatpush1.bf16.msra.mxu0 0
          %910 = vmatprep.subr.bf16.mxu0 0
          %911 = vmatpush1.bf16.msra.mxu0 0
          %912 = vmatprep.subr.bf16.mxu0 0
          %913 = vmatpush1.bf16.msra.mxu0 0
          %914 = vmatprep.subr.bf16.mxu0 0
          %915 = vmatpush1.bf16.msra.mxu0 0
          %916 = vmatprep.subr.bf16.mxu0 0
          %917 = vmatpush1.bf16.msra.mxu0 0
          %918 = vmatprep.subr.bf16.mxu0 0
          %919 = vmatpush1.bf16.msra.mxu0 0
          %920 = vmatprep.subr.bf16.mxu0 0
          %921 = vmatpush1.bf16.msra.mxu0 0
          %922 = vmatprep.subr.bf16.mxu0 0
          %923 = vmatpush1.bf16.msra.mxu0 0
          %924 = vmatprep.subr.bf16.mxu0 0
          %925 = vmatpush1.bf16.msra.mxu0 0
          %926 = vmatprep.mubr.bf16.mxu0 0
          %927 = vmatmul.mubr.bf16.gmra.mrb[0].mxu0 %v892
          %v928 = vpop.f32.mrb[0].mxu0
          %v929 = vadd.f32 0.0, %v928
          %v930 = vpop.f32.mrb[0].mxu0
          %v931 = vpop.f32.mrb[0].mxu0
          %v932 = vadd.f32 0.0, %v931
          %v933 = vpop.f32.mrb[0].mxu0
          %934 = vdwg.mxu0
          %v937 = vunpack.c.l.b16 %v879
          %v938 = vunpack.c.l.b16 %v880
          %v939 = vpack.c.b16 %v938, %v937
          %v942 = vsel %vm639, %v874, 0
          %944 = vmatprep.subr.bf16.mxu0 0
          %945 = vmatpush1.bf16.msra.mxu0 %v939
          %946 = vmatprep.subr.bf16.mxu0 0
          %947 = vmatpush1.bf16.msra.mxu0 0
          %948 = vmatprep.subr.bf16.mxu0 0
          %949 = vmatpush1.bf16.msra.mxu0 0
          %950 = vmatprep.subr.bf16.mxu0 0
          %951 = vmatpush1.bf16.msra.mxu0 0
          %952 = vmatprep.subr.bf16.mxu0 0
          %953 = vmatpush1.bf16.msra.mxu0 0
          %954 = vmatprep.subr.bf16.mxu0 0
          %955 = vmatpush1.bf16.msra.mxu0 0
          %956 = vmatprep.subr.bf16.mxu0 0
          %957 = vmatpush1.bf16.msra.mxu0 0
          %958 = vmatprep.subr.bf16.mxu0 0
          %959 = vmatpush1.bf16.msra.mxu0 0
          %960 = vmatprep.subr.bf16.mxu0 0
          %961 = vmatpush1.bf16.msra.mxu0 0
          %962 = vmatprep.subr.bf16.mxu0 0
          %963 = vmatpush1.bf16.msra.mxu0 0
          %964 = vmatprep.subr.bf16.mxu0 0
          %965 = vmatpush1.bf16.msra.mxu0 0
          %966 = vmatprep.subr.bf16.mxu0 0
          %967 = vmatpush1.bf16.msra.mxu0 0
          %968 = vmatprep.subr.bf16.mxu0 0
          %969 = vmatpush1.bf16.msra.mxu0 0
          %970 = vmatprep.subr.bf16.mxu0 0
          %971 = vmatpush1.bf16.msra.mxu0 0
          %972 = vmatprep.subr.bf16.mxu0 0
          %973 = vmatpush1.bf16.msra.mxu0 0
          %974 = vmatprep.subr.bf16.mxu0 0
          %975 = vmatpush1.bf16.msra.mxu0 0
          %976 = vmatprep.mubr.bf16.mxu0 0
          %977 = vmatmul.mubr.bf16.gmra.mrb[0].mxu0 %v942
          %v978 = vpop.f32.mrb[0].mxu0
          %v979 = vadd.f32 0.0, %v978
          %v980 = vpop.f32.mrb[0].mxu0
          %v981 = vpop.f32.mrb[0].mxu0
          %v982 = vadd.f32 0.0, %v981
          %v983 = vpop.f32.mrb[0].mxu0
          %984 = vdwg.mxu0
          %v987 = vunpack.c.l.b16 %v881
          %v988 = vunpack.c.l.b16 %v882
          %v989 = vpack.c.b16 %v988, %v987
          %v992 = vsel %vm639, %v875, 0
          %994 = vmatprep.subr.bf16.mxu0 0
          %995 = vmatpush1.bf16.msra.mxu0 %v989
          %996 = vmatprep.subr.bf16.mxu0 0
          %997 = vmatpush1.bf16.msra.mxu0 0
          %998 = vmatprep.subr.bf16.mxu0 0
          %999 = vmatpush1.bf16.msra.mxu0 0
          %1000 = vmatprep.subr.bf16.mxu0 0
          %1001 = vmatpush1.bf16.msra.mxu0 0
          %1002 = vmatprep.subr.bf16.mxu0 0
          %1003 = vmatpush1.bf16.msra.mxu0 0
          %1004 = vmatprep.subr.bf16.mxu0 0
          %1005 = vmatpush1.bf16.msra.mxu0 0
          %1006 = vmatprep.subr.bf16.mxu0 0
          %1007 = vmatpush1.bf16.msra.mxu0 0
          %1008 = vmatprep.subr.bf16.mxu0 0
          %1009 = vmatpush1.bf16.msra.mxu0 0
          %1010 = vmatprep.subr.bf16.mxu0 0
          %1011 = vmatpush1.bf16.msra.mxu0 0
          %1012 = vmatprep.subr.bf16.mxu0 0
          %1013 = vmatpush1.bf16.msra.mxu0 0
          %1014 = vmatprep.subr.bf16.mxu0 0
          %1015 = vmatpush1.bf16.msra.mxu0 0
          %1016 = vmatprep.subr.bf16.mxu0 0
          %1017 = vmatpush1.bf16.msra.mxu0 0
          %1018 = vmatprep.subr.bf16.mxu0 0
          %1019 = vmatpush1.bf16.msra.mxu0 0
          %1020 = vmatprep.subr.bf16.mxu0 0
          %1021 = vmatpush1.bf16.msra.mxu0 0
          %1022 = vmatprep.subr.bf16.mxu0 0
          %1023 = vmatpush1.bf16.msra.mxu0 0
          %1024 = vmatprep.subr.bf16.mxu0 0
          %1025 = vmatpush1.bf16.msra.mxu0 0
          %1026 = vmatprep.mubr.bf16.mxu0 0
          %1027 = vmatmul.mubr.bf16.gmra.mrb[0].mxu0 %v992
          %v1028 = vpop.f32.mrb[0].mxu0
          %v1029 = vadd.f32 0.0, %v1028
          %v1030 = vpop.f32.mrb[0].mxu0
          %v1031 = vpop.f32.mrb[0].mxu0
          %v1032 = vadd.f32 0.0, %v1031
          %v1033 = vpop.f32.mrb[0].mxu0
          %1034 = vdwg.mxu0
          %v1037 = vunpack.c.l.b16 %v883
          %v1038 = vunpack.c.l.b16 %v884
          %v1039 = vpack.c.b16 %v1038, %v1037
          %v1042 = vsel %vm639, %v876, 0
          %1044 = vmatprep.subr.bf16.mxu0 0
          %1045 = vmatpush1.bf16.msra.mxu0 %v1039
          %1046 = vmatprep.subr.bf16.mxu0 0
          %1047 = vmatpush1.bf16.msra.mxu0 0
          %1048 = vmatprep.subr.bf16.mxu0 0
          %1049 = vmatpush1.bf16.msra.mxu0 0
          %1050 = vmatprep.subr.bf16.mxu0 0
          %1051 = vmatpush1.bf16.msra.mxu0 0
          %1052 = vmatprep.subr.bf16.mxu0 0
          %1053 = vmatpush1.bf16.msra.mxu0 0
          %1054 = vmatprep.subr.bf16.mxu0 0
          %1055 = vmatpush1.bf16.msra.mxu0 0
          %1056 = vmatprep.subr.bf16.mxu0 0
          %1057 = vmatpush1.bf16.msra.mxu0 0
          %1058 = vmatprep.subr.bf16.mxu0 0
          %1059 = vmatpush1.bf16.msra.mxu0 0
          %1060 = vmatprep.subr.bf16.mxu0 0
          %1061 = vmatpush1.bf16.msra.mxu0 0
          %1062 = vmatprep.subr.bf16.mxu0 0
          %1063 = vmatpush1.bf16.msra.mxu0 0
          %1064 = vmatprep.subr.bf16.mxu0 0
          %1065 = vmatpush1.bf16.msra.mxu0 0
          %1066 = vmatprep.subr.bf16.mxu0 0
          %1067 = vmatpush1.bf16.msra.mxu0 0
          %1068 = vmatprep.subr.bf16.mxu0 0
          %1069 = vmatpush1.bf16.msra.mxu0 0
          %1070 = vmatprep.subr.bf16.mxu0 0
          %1071 = vmatpush1.bf16.msra.mxu0 0
          %1072 = vmatprep.subr.bf16.mxu0 0
          %1073 = vmatpush1.bf16.msra.mxu0 0
          %1074 = vmatprep.subr.bf16.mxu0 0
          %1075 = vmatpush1.bf16.msra.mxu0 0
          %1076 = vmatprep.mubr.bf16.mxu0 0
          %1077 = vmatmul.mubr.bf16.gmra.mrb[0].mxu0 %v1042
          %v1078 = vpop.f32.mrb[0].mxu0
          %v1079 = vadd.f32 0.0, %v1078
          %v1080 = vpop.f32.mrb[0].mxu0
          %v1081 = vpop.f32.mrb[0].mxu0
          %v1082 = vadd.f32 0.0, %v1081
          %v1083 = vpop.f32.mrb[0].mxu0
          %1084 = vdwg.mxu0
          %v1085 = vadd.f32 %v865, %v929
          %v1086 = vadd.f32 %v866, %v932
          %v1087 = vadd.f32 %v867, %v979
          %v1088 = vadd.f32 %v868, %v982
          %v1089 = vadd.f32 %v869, %v1029
          %v1090 = vadd.f32 %v870, %v1032
          %v1091 = vadd.f32 %v871, %v1079
          %v1092 = vadd.f32 %v872, %v1082
          %1093 = vst [vmem:[#allocation4] sm:$0xff] %v1085
          %1094 = vst [vmem:[#allocation4 + $0x8] sm:$0xff] %v1086
          %1095 = vst [vmem:[#allocation4 + $0x10] sm:$0xff] %v1087
          %1096 = vst [vmem:[#allocation4 + $0x18] sm:$0xff] %v1088
          %1097 = vst [vmem:[#allocation4 + $0x20] sm:$0xff] %v1089
          %1098 = vst [vmem:[#allocation4 + $0x28] sm:$0xff] %v1090
          %1099 = vst [vmem:[#allocation4 + $0x30] sm:$0xff] %v1091
          %1100 = vst [vmem:[#allocation4 + $0x38] sm:$0xff] %v1092
          %1101 = vst.msk [vmem:[#allocation2] sm:$0xff] %vm808, %v664
          %1102 = vst.msk [vmem:[#allocation2 + $0x8] sm:$0xff] %vm808, %v665
          %1103 = vst.msk [vmem:[#allocation2 + $0x10] sm:$0xff] %vm808, %v666
          %1104 = vst.msk [vmem:[#allocation2 + $0x18] sm:$0xff] %vm808, %v667
          %1105 = vst.msk [vmem:[#allocation2 + $0x20] sm:$0xff] %vm808, %v668
          %1106 = vst.msk [vmem:[#allocation2 + $0x28] sm:$0xff] %vm808, %v669
          %1107 = vst.msk [vmem:[#allocation2 + $0x30] sm:$0xff] %vm808, %v670
          %1108 = vst.msk [vmem:[#allocation2 + $0x38] sm:$0xff] %vm808, %v671
        $region60: #{tpu_custom_call.1} parent=35 // pred_fallthru
          _
        // Predicated region
        $region61: #{tpu_custom_call.1} parent=35 // pred_check
          %p1109 = pneg %p363
        $region62: #{tpu_custom_call.1} parent=35 // pred_check_branch
          %1111 = sbr.rel (%p1109) target = $region64
        $region63: #{tpu_custom_call.1} parent=35 // pred_region
          %v1112 = vld [vmem:[#allocation3] sm:$0xff]
          %v1113 = vld [vmem:[#allocation3 + $0x8] sm:$0xff]
          %v1114 = vld [vmem:[#allocation3 + $0x10] sm:$0xff]
          %v1115 = vld [vmem:[#allocation3 + $0x18] sm:$0xff]
          %v1116 = vld [vmem:[#allocation3 + $0x20] sm:$0xff]
          %v1117 = vld [vmem:[#allocation3 + $0x28] sm:$0xff]
          %v1118 = vld [vmem:[#allocation3 + $0x30] sm:$0xff]
          %v1119 = vld [vmem:[#allocation3 + $0x38] sm:$0xff]
          %v1120 = vrcp.pop %v1112
          %v1121 = vrcp.pop %v1113
          %v1122 = vrcp.pop %v1114
          %v1123 = vrcp.pop %v1115
          %v1124 = vrcp.pop %v1116
          %v1125 = vrcp.pop %v1117
          %v1126 = vrcp.pop %v1118
          %v1127 = vrcp.pop %v1119
          %v1128 = vld [vmem:[#allocation4] sm:$0xff]
          %v1129 = vld [vmem:[#allocation4 + $0x8] sm:$0xff]
          %v1130 = vld [vmem:[#allocation4 + $0x10] sm:$0xff]
          %v1131 = vld [vmem:[#allocation4 + $0x18] sm:$0xff]
          %v1132 = vld [vmem:[#allocation4 + $0x20] sm:$0xff]
          %v1133 = vld [vmem:[#allocation4 + $0x28] sm:$0xff]
          %v1134 = vld [vmem:[#allocation4 + $0x30] sm:$0xff]
          %v1135 = vld [vmem:[#allocation4 + $0x38] sm:$0xff]
          %1137 = vset.pattern.permute.xlu0 0
          %1138 = vperm.xlu0 %1137, %v1120
          %v1139 = vpop.permute.xlu0 %1138
          %1142 = vset.pattern.permute.xlu0 0
          %1143 = vperm.xlu0 %1142, %v1121
          %v1144 = vpop.permute.xlu0 %1143
          %1147 = vset.pattern.permute.xlu0 0
          %1148 = vperm.xlu0 %1147, %v1122
          %v1149 = vpop.permute.xlu0 %1148
          %1152 = vset.pattern.permute.xlu0 0
          %1153 = vperm.xlu0 %1152, %v1123
          %v1154 = vpop.permute.xlu0 %1153
          %1157 = vset.pattern.permute.xlu0 0
          %1158 = vperm.xlu0 %1157, %v1124
          %v1159 = vpop.permute.xlu0 %1158
          %1162 = vset.pattern.permute.xlu0 0
          %1163 = vperm.xlu0 %1162, %v1125
          %v1164 = vpop.permute.xlu0 %1163
          %1167 = vset.pattern.permute.xlu0 0
          %1168 = vperm.xlu0 %1167, %v1126
          %v1169 = vpop.permute.xlu0 %1168
          %1172 = vset.pattern.permute.xlu0 0
          %1173 = vperm.xlu0 %1172, %v1127
          %v1174 = vpop.permute.xlu0 %1173
          %v1176 = vmul.f32 %v1128, %v1139
          %v1177 = vmul.f32 %v1129, %v1144
          %v1178 = vmul.f32 %v1130, %v1149
          %v1179 = vmul.f32 %v1131, %v1154
          %v1180 = vmul.f32 %v1132, %v1159
          %v1181 = vmul.f32 %v1133, %v1164
          %v1182 = vmul.f32 %v1134, %v1169
          %v1183 = vmul.f32 %v1135, %v1174
          %v1184 = vpack.c.bf16 %v1177, %v1176
          %v1185 = vpack.c.bf16 %v1179, %v1178
          %v1186 = vpack.c.bf16 %v1181, %v1180
          %v1187 = vpack.c.bf16 %v1183, %v1182
          %v1192 = vunpack.c.l.b16 %v1184
          %v1193 = vunpack.c.h.b16 %v1184
          %v1194 = vunpack.c.l.b16 %v1185
          %v1195 = vunpack.c.h.b16 %v1185
          %v1196 = vunpack.c.l.b16 %v1186
          %v1197 = vunpack.c.h.b16 %v1186
          %v1198 = vunpack.c.l.b16 %v1187
          %v1199 = vunpack.c.h.b16 %v1187
          %v1200 = vpack.c.b16 %v1192, %v1192
          %v1201 = vpack.c.b16 %v1193, %v1193
          %v1202 = vpack.c.b16 %v1194, %v1194
          %v1203 = vpack.c.b16 %v1195, %v1195
          %v1204 = vpack.c.b16 %v1196, %v1196
          %v1205 = vpack.c.b16 %v1197, %v1197
          %v1206 = vpack.c.b16 %v1198, %v1198
          %v1207 = vpack.c.b16 %v1199, %v1199
          %1216 = vst [vmem:[%s356] sm:$0xf] %v1200
          %1217 = vst [vmem:[%s356 + $0x4] sm:$0xf] %v1201
          %1218 = vst [vmem:[%s356 + $0x8] sm:$0xf] %v1202
          %1219 = vst [vmem:[%s356 + $0xc] sm:$0xf] %v1203
          %1220 = vst [vmem:[%s356 + $0x10] sm:$0xf] %v1204
          %1221 = vst [vmem:[%s356 + $0x14] sm:$0xf] %v1205
          %1222 = vst [vmem:[%s356 + $0x18] sm:$0xf] %v1206
          %1223 = vst [vmem:[%s356 + $0x1c] sm:$0xf] %v1207
        $region64: #{tpu_custom_call.1} parent=35 // pred_fallthru
          _
        %s1224 = sand.u32 %s171, 1
        %s1225 = scalar_lea.sflag [#allocation9], %s1224
        %s1226 = sand.u32 %s171, 1
        %s1227 = smul.addr %s1226, 32
        %s1228 = scalar_lea.vmem [#allocation15], %s1227
        // Predicated region
        $region65: #{tpu_custom_call.1} parent=35 // pred_check
          %p1229 = pneg %p181
        $region66: #{tpu_custom_call.1} parent=35 // pred_check_branch
          %1231 = sbr.rel (%p1229) target = $region68
        $region67: #{tpu_custom_call.1} parent=35 // pred_region
          %s1232 = smul.u32 2, %s36
          %s1234 = ssub.s32 512, 512
          %1235 = vsyncadd %s1225, %s1234
          %s1236 = smul.addr %s35, 8
          %s1237 = sadd.s32 %s1232, %s1236
          %s1238 = smul.addr %s1237, 64
          %s1239 = scalar_lea.hbm %s5, %s1238
          %s1240 = sshll.u32 %s1228, 4
          %s1241 = int_to_ptr.vmem [resolvable:$true] %s1240
          %1246 = dma.vmem_to_hbm [thread:$0]  %s1241, 512, %s1239, %s1225, 64, 64, 4
        $region68: #{tpu_custom_call.1} parent=35 // pred_fallthru
          _
      $region36: #{tpu_custom_call.1} parent=5 // pred_fallthru
        _
      %p1247 = scmp.le.s32.totalorder 2, %s25
      // Predicated region
      $region69: #{tpu_custom_call.1} parent=5 // pred_check
        %p1248 = pneg %p1247
      $region70: #{tpu_custom_call.1} parent=5 // pred_check_branch
        %1250 = sbr.rel (%p1248) target = $region72
      $region71: #{tpu_custom_call.1} parent=5 // pred_region
        %s1251 = ssub.s32 %s25, 2
        // Predicated region
        $region73: #{tpu_custom_call.1} parent=71 // pred_check
          %p1252 = pneg %p187
        $region74: #{tpu_custom_call.1} parent=71 // pred_check_branch
          %1254 = sbr.rel (%p1252) target = $region76
        $region75: #{tpu_custom_call.1} parent=71 // pred_region
          %s1255 = sand.u32 %s172, 1
          %s1256 = scalar_lea.sflag [#allocation9], %s1255
          %s1257 = sand.u32 %s172, 1
          %s1258 = smul.addr %s1257, 32
          %s1259 = scalar_lea.vmem [#allocation15], %s1258
          %1260 = dma.done %s1256, 512
        $region76: #{tpu_custom_call.1} parent=71 // pred_fallthru
          _
      $region72: #{tpu_custom_call.1} parent=5 // pred_fallthru
        _
    $region6: #{tpu_custom_call.1} parent=1 // loop_footer
      %s29 = sadd.s32 1, %s25
    $region7: #{tpu_custom_call.1} parent=1 // loop_footer_branch
      %24 = sbr.rel target = $region3
    $region8: #{tpu_custom_call.1} parent=1 // loop_exit
      _
    %1261 = vsyncpa [#allocation8], 1
    %s1262 = scalar_lea.sflag [#allocation8], 1
    %1263 = vsyncpa %s1262, 1
    %1264 = vsyncpa [#allocation11], 1
    %s1265 = scalar_lea.sflag [#allocation11], 1
    %1266 = vsyncpa %s1265, 1
    %1267 = vsyncpa [#allocation14], 1
    %s1268 = scalar_lea.sflag [#allocation14], 1
    %1269 = vsyncpa %s1268, 1
    %1270 = vsyncpa [#allocation9], 1
    %s1271 = scalar_lea.sflag [#allocation9], 1
    %1272 = vsyncpa %s1271, 1

</llo_original>
